<compile_context>
chip_gen: v7x
topology: tpu7x:2x2x1
jax: 0.10.0
libtpu: 0.0.40
codegen_flags: <defaults>
</compile_context>

<pallas_src>
import jax
import jax.numpy as jnp
from jax.experimental import pallas as pl
from jax.experimental.pallas import tpu as pltpu

LANE = 128

# TODO(synk): training-mode BatchNorm1d (batch statistics) and Dropout2d masking
#             are not modeled; this implements eval-mode semantics (running
#             stats, dp_rate=0).


def _round_up(x, m):
    return ((x + m - 1) // m) * m


def _pad_to(a, shape):
    return jnp.pad(a, [(0, t - s) for s, t in zip(a.shape, shape)])


# ------------------------------ ResBlock kernel ------------------------------
def _resblock_kernel(x_ref, a_ref, wx_ref, wg2_ref, vec_ref, o_ref):
    BB, N, Din = x_ref.shape
    Dp = o_ref.shape[-1]

    # One X-side matmul produces both the graph-conv features and the gated
    # shortcut branch (Wx = [Wfc*s1 | Wsc@Wg1]).  bf16 operands, f32 accumulate.
    x2d = x_ref[...].reshape(BB * N, Din).astype(jnp.bfloat16)
    y = jnp.dot(x2d, wx_ref[...], preferred_element_type=jnp.float32)
    h = y[:, :Dp] + vec_ref[0:1, :]           # (X@Wfc + bfc) * s1
    x1 = y[:, Dp:] + vec_ref[2:3, :]          # g_fc1(shortcut(X))

    # Adjacency propagation, batched over the BB graphs in this block.
    prop = jnp.einsum(
        "bij,bjd->bid",
        a_ref[...].astype(jnp.bfloat16),
        h.reshape(BB, N, Dp).astype(jnp.bfloat16),
        preferred_element_type=jnp.float32)
    xr = jnp.maximum(prop.reshape(BB * N, Dp) + vec_ref[1:2, :], 0.0)  # relu(bn1)

    x2 = jnp.dot(xr.astype(jnp.bfloat16), wg2_ref[...],
                 preferred_element_type=jnp.float32) + vec_ref[3:4, :]

    g = jax.nn.sigmoid(x1 + x2)
    z = x2 + g * (x1 - x2)                    # == x1*g + x2*(1-g)
    out = jnp.maximum(z * vec_ref[4:5, :] + vec_ref[5:6, :], 0.0)      # relu(bn2)

    o_ref[...] = out.reshape(BB, N, Dp).astype(o_ref.dtype)


def _resblock_call(x, a_bf16, wx, wg2, vec, Dp, block_b=None):
    B, N, Din = x.shape
    if block_b is None:
        # Keep >=2 grid steps when B allows so v7x's two TensorCores both get
        # work; each step still batches block_b*N rows through the MXU.
        # (On single-TC parts, block_b=B collapses the grid entirely.)
        block_b = -(-B // 2) if B > 1 else B
    if B % block_b != 0:
        block_b = 1
    grid_b = B // block_b

    return pl.pallas_call(
        _resblock_kernel,
        out_shape=jax.ShapeDtypeStruct((B, N, Dp), jnp.float32),
        grid_spec=pltpu.PrefetchScalarGridSpec(
            num_scalar_prefetch=0,
            grid=(grid_b,),
            in_specs=[
                pl.BlockSpec((block_b, N, Din), lambda i: (i, 0, 0)),   # X
                pl.BlockSpec((block_b, N, N), lambda i: (i, 0, 0)),     # A (bf16)
                pl.BlockSpec(wx.shape, lambda i: (0, 0)),               # [Wfc*s1 | Wsc@Wg1]
                pl.BlockSpec(wg2.shape, lambda i: (0, 0)),              # Wg2
                pl.BlockSpec(vec.shape, lambda i: (0, 0)),              # packed per-channel vecs
            ],
            out_specs=pl.BlockSpec((block_b, N, Dp), lambda i: (i, 0, 0)),
        ),
        compiler_params=pltpu.CompilerParams(
            dimension_semantics=("parallel",)),
    )(x, a_bf16, wx, wg2, vec)


# ------------------------------- Readout kernel ------------------------------
def _readout_kernel(x_ref, w_ref, b_ref, o_ref):
    # mean over nodes commutes with the Linear: mean_n(X@W + b) = mean_n(X)@W + b
    xm = jnp.mean(x_ref[...], axis=1)                     # (B, Dp) f32
    y = jnp.dot(xm.astype(jnp.bfloat16), w_ref[...],
                preferred_element_type=jnp.float32)
    o_ref[...] = (y + b_ref[...]).astype(o_ref.dtype)


def _readout_call(x, w_ro, b_ro):
    B, N, Dp = x.shape
    Mp = w_ro.shape[1]
    return pl.pallas_call(
        _readout_kernel,
        out_shape=jax.ShapeDtypeStruct((B, Mp), jnp.float32),
        grid_spec=pltpu.PrefetchScalarGridSpec(
            num_scalar_prefetch=0,
            grid=(1,),
            in_specs=[
                pl.BlockSpec((B, N, Dp), lambda i: (0, 0, 0)),
                pl.BlockSpec(w_ro.shape, lambda i: (0, 0)),
                pl.BlockSpec(b_ro.shape, lambda i: (0, 0)),
            ],
            out_specs=pl.BlockSpec((B, Mp), lambda i: (0, 0)),
        ),
        compiler_params=pltpu.CompilerParams(
            dimension_semantics=("arbitrary",)),
    )(x, w_ro, b_ro)


# ----------------------- weight prep (algebraic fusion) ----------------------
def _fold_bn(bn, eps):
    gamma, beta, mean, var = bn
    s = gamma * jax.lax.rsqrt(var + eps)
    t = beta - mean * s
    return s, t


def _prep_layer(lp, d_in_kernel, Dp, eps):
    """Fold bn1 into the fc, fuse shortcut@g_fc1, pad everything lane-dense."""
    s1, t1 = _fold_bn(lp["bn1"], eps)
    s2, t2 = _fold_bn(lp["bn2"], eps)

    wfc_f = lp["wfc"] * s1[None, :]
    bfc_f = lp["bfc"] * s1
    w_skip = lp["wg1"] if lp["wsc"] is None else lp["wsc"] @ lp["wg1"]

    wx = jnp.concatenate(
        [_pad_to(wfc_f, (wfc_f.shape[0], Dp)),
         _pad_to(w_skip, (w_skip.shape[0], Dp))], axis=1)
    wx = _pad_to(wx, (d_in_kernel, 2 * Dp)).astype(jnp.bfloat16)

    wg2 = _pad_to(lp["wg2"], (Dp, Dp)).astype(jnp.bfloat16)

    rows = [bfc_f, t1, lp["bg1"], lp["bg2"], s2, t2]
    vec = jnp.stack([_pad_to(r, (Dp,)) for r in rows]
                    + [jnp.zeros((Dp,), jnp.float32)] * 2)   # (8, Dp) = one tile
    return wx, wg2, vec


# -------------------------------- Encoder fwd --------------------------------
def encoder_forward(input_X, A, weights, cfg):
    """input_X: [B, N, 1+n_feat] (channel 0 = integer token id), A: [B, N, N].
       Returns (x [B,N,out_dim], A, molvec [B,molvec_dim]) like Encoder.forward."""
    vocab = cfg["vocab_size"]
    out_dim = cfg["out_dim"]
    molvec_dim = cfg["molvec_dim"]
    eps = cfg["eps"]
    Dp = _round_up(out_dim, LANE)
    Mp = _round_up(molvec_dim, LANE)

    # Identity one-hot embedding + feature concat (pure data prep, plain JAX).
    tok = input_X[:, :, 0].astype(jnp.int32)
    x = jnp.concatenate(
        [jax.nn.one_hot(tok, vocab, dtype=jnp.float32),
         input_X[:, :, 1:].astype(jnp.float32)], axis=-1)

    # Ship A in bf16 (exact for 0/1 adjacency): halves its DMA/VMEM footprint
    # for every layer; the original f32 A is what gets returned.
    a_bf16 = A.astype(jnp.bfloat16)

    for lp in weights["layers"]:
        wx, wg2, vec = _prep_layer(lp, x.shape[-1], Dp, eps)
        x = _resblock_call(x, a_bf16, wx, wg2, vec, Dp)

    w_ro = _pad_to(weights["w_ro"], (Dp, Mp)).astype(jnp.bfloat16)
    b_ro = _pad_to(weights["b_ro"][None, :], (1, Mp))
    molvec = _readout_call(x, w_ro, b_ro)

    return x[..., :out_dim], A, molvec[:, :molvec_dim]


# --------------------------- weights + JAX reference -------------------------
def make_encoder_weights(key, cfg, n_layer):
    f32 = jnp.float32
    vocab, n_feat = cfg["vocab_size"], cfg["n_feat_extra"]
    out_dim, molvec_dim = cfg["out_dim"], cfg["molvec_dim"]
    in_dim = vocab + n_feat
    keys = jax.random.split(key, n_layer + 1)

    def bn_params(k):
        kg, kb, km, kv = jax.random.split(k, 4)
        gamma = 1.0 + 0.1 * jax.random.normal(kg, (out_dim,), f32)
        beta = 0.1 * jax.random.normal(kb, (out_dim,), f32)
        mean = 0.1 * jax.random.normal(km, (out_dim,), f32)
        var = 1.0 + 0.1 * jax.random.uniform(kv, (out_dim,), f32)
        return (gamma, beta, mean, var)

    layers = []
    for li in range(n_layer):
        d_in = in_dim if li == 0 else out_dim
        ks = jax.random.split(keys[li], 9)
        layers.append(dict(
            wfc=0.1 * jax.random.normal(ks[0], (d_in, out_dim), f32),
            bfc=0.1 * jax.random.normal(ks[1], (out_dim,), f32),
            wsc=(0.1 * jax.random.normal(ks[2], (d_in, out_dim), f32)
                 if d_in != out_dim else None),
            wg1=0.1 * jax.random.normal(ks[3], (out_dim, out_dim), f32),
            bg1=0.1 * jax.random.normal(ks[4], (out_dim,), f32),
            wg2=0.1 * jax.random.normal(ks[5], (out_dim, out_dim), f32),
            bg2=0.1 * jax.random.normal(ks[6], (out_dim,), f32),
            bn1=bn_params(ks[7]),
            bn2=bn_params(ks[8]),
        ))
    kr1, kr2 = jax.random.split(keys[-1], 2)
    w_ro = 0.1 * jax.random.normal(kr1, (out_dim, molvec_dim), f32)
    b_ro = 0.1 * jax.random.normal(kr2, (molvec_dim,), f32)
    return dict(layers=layers, w_ro=w_ro, b_ro=b_ro)


def encoder_ref(input_X, A, weights, cfg):
    """Plain-JAX f32 reference of the same (eval-mode) forward pass."""
    vocab, eps = cfg["vocab_size"], cfg["eps"]
    tok = input_X[:, :, 0].astype(jnp.int32)
    x = jnp.concatenate(
        [jax.nn.one_hot(tok, vocab, dtype=jnp.float32),
         input_X[:, :, 1:].astype(jnp.float32)], axis=-1)
    for lp in weights["layers"]:
        s1, t1 = _fold_bn(lp["bn1"], eps)
        s2, t2 = _fold_bn(lp["bn2"], eps)
        h = x @ lp["wfc"] + lp["bfc"]
        y = jnp.einsum("bij,bjd->bid", A, h)
        y = jnp.maximum(y * s1 + t1, 0.0)
        sc = x if lp["wsc"] is None else x @ lp["wsc"]
        x1 = sc @ lp["wg1"] + lp["bg1"]
        x2 = y @ lp["wg2"] + lp["bg2"]
        g = jax.nn.sigmoid(x1 + x2)
        z = x1 * g + x2 * (1.0 - g)
        x = jnp.maximum(z * s2 + t2, 0.0)
    molvec = jnp.mean(x @ weights["w_ro"] + weights["b_ro"], axis=1)
    return x, A, molvec


if __name__ == "__main__":
    B, N = 2, 8
    cfg = dict(vocab_size=10, n_feat_extra=6, out_dim=32, molvec_dim=64, eps=1e-5)
    N_LAYER = 2

    key = jax.random.PRNGKey(0)
    kt, kf, ka, kw = jax.random.split(key, 4)

    tok = jax.random.randint(kt, (B, N, 1), 0, cfg["vocab_size"]).astype(jnp.float32)
    feats = jax.random.normal(kf, (B, N, cfg["n_feat_extra"]), jnp.float32)
    input_X = jnp.concatenate([tok, feats], axis=-1)          # [B, N, 1 + n_feat]

    A = (jax.random.uniform(ka, (B, N, N), jnp.float32) > 0.5).astype(jnp.float32)
    A = jnp.clip(A + jnp.transpose(A, (0, 2, 1)) + jnp.eye(N)[None], 0.0, 1.0)

    weights = make_encoder_weights(kw, cfg, N_LAYER)

    fwd = jax.jit(lambda X, Adj, W: encoder_forward(X, Adj, W, cfg))
    x_out, A_out, molvec = fwd(input_X, A, weights)
    jax.block_until_ready((x_out, A_out, molvec))

    x_ref, A_ref, mol_ref = encoder_ref(input_X, A, weights, cfg)

    assert x_out.shape == (B, N, cfg["out_dim"])
    assert molvec.shape == (B, cfg["molvec_dim"])
    assert jnp.allclose(A_out, A)
    # bf16 matmul operands (f32 accumulate) -> loosened tolerance vs f32 reference.
    assert jnp.allclose(x_out, x_ref, atol=5e-2, rtol=5e-2), \
        f"x mismatch: {jnp.max(jnp.abs(x_out - x_ref))}"
    assert jnp.allclose(molvec, mol_ref, atol=5e-2, rtol=5e-2), \
        f"molvec mismatch: {jnp.max(jnp.abs(molvec - mol_ref))}"

    print("KERNEL_OK")
</pallas_src>

<mosaic_0001>
module attributes {stable_mosaic.version = 11 : i64} {
  func.func @_resblock_kernel(%arg0: i32, %arg1: memref<1x8x128xf32, #tpu.memory_space<vmem>>, %arg2: memref<1x8x8xbf16, #tpu.memory_space<vmem>>, %arg3: memref<128x256xbf16, #tpu.memory_space<vmem>>, %arg4: memref<128x128xbf16, #tpu.memory_space<vmem>>, %arg5: memref<8x128xf32, #tpu.memory_space<vmem>>, %arg6: memref<1x8x128xf32, #tpu.memory_space<vmem>>) attributes {dimension_semantics = [#tpu.dimension_semantics<parallel>], iteration_bounds = array<i64: 2>, scalar_prefetch = 0 : i64, scratch_operands = 0 : i64, tpu.core_type = #tpu.core_type<tc>, window_params = [{transform_indices = @transform_0, window_bounds = array<i64: 1, 8, 128>}, {transform_indices = @transform_1, window_bounds = array<i64: 1, 8, 8>}, {pipeline_mode = #tpu.pipeline_mode<synchronous>, transform_indices = @transform_2, window_bounds = array<i64: 128, 256>}, {pipeline_mode = #tpu.pipeline_mode<synchronous>, transform_indices = @transform_3, window_bounds = array<i64: 128, 128>}, {pipeline_mode = #tpu.pipeline_mode<synchronous>, transform_indices = @transform_4, window_bounds = array<i64: 8, 128>}, {transform_indices = @transform_5, window_bounds = array<i64: 1, 8, 128>}]} {
    %c0 = arith.constant 0 : index
    %c0_0 = arith.constant 0 : index
    %c0_1 = arith.constant 0 : index
    %0 = vector.load %arg1[%c0, %c0_0, %c0_1] : memref<1x8x128xf32, #tpu.memory_space<vmem>>, vector<1x8x128xf32>
    %1 = vector.shape_cast %0 : vector<1x8x128xf32> to vector<8x128xf32>
    %2 = arith.truncf %1 : vector<8x128xf32> to vector<8x128xbf16>
    %c0_2 = arith.constant 0 : index
    %c0_3 = arith.constant 0 : index
    %3 = vector.load %arg3[%c0_2, %c0_3] : memref<128x256xbf16, #tpu.memory_space<vmem>>, vector<128x256xbf16>
    %cst = arith.constant dense<0.000000e+00> : vector<8x256xf32>
    %4 = tpu.matmul %2, %3, %cst {dimension_numbers = #tpu.dot_dimension_numbers<[1], [0], [0], [1], [0, 0, 1, 1], [], []>} : vector<8x128xbf16>, vector<128x256xbf16>, vector<8x256xf32> -> vector<8x256xf32>
    %5 = vector.extract_strided_slice %4 {offsets = [0, 0], sizes = [8, 128], strides = [1, 1]} : vector<8x256xf32> to vector<8x128xf32>
    %c0_4 = arith.constant 0 : index
    %c0_5 = arith.constant 0 : index
    %6 = vector.load %arg5[%c0_4, %c0_5] : memref<8x128xf32, #tpu.memory_space<vmem>>, vector<1x128xf32>
    %7 = vector.broadcast %6 : vector<1x128xf32> to vector<8x128xf32>
    %8 = arith.addf %5, %7 : vector<8x128xf32>
    %9 = vector.extract_strided_slice %4 {offsets = [0, 128], sizes = [8, 128], strides = [1, 1]} : vector<8x256xf32> to vector<8x128xf32>
    %c2 = arith.constant 2 : index
    %c0_6 = arith.constant 0 : index
    %10 = vector.load %arg5[%c2, %c0_6] : memref<8x128xf32, #tpu.memory_space<vmem>>, vector<1x128xf32>
    %11 = vector.broadcast %10 : vector<1x128xf32> to vector<8x128xf32>
    %12 = arith.addf %9, %11 : vector<8x128xf32>
    %c0_7 = arith.constant 0 : index
    %c0_8 = arith.constant 0 : index
    %c0_9 = arith.constant 0 : index
    %13 = vector.load %arg2[%c0_7, %c0_8, %c0_9] : memref<1x8x8xbf16, #tpu.memory_space<vmem>>, vector<1x8x8xbf16>
    %14 = vector.shape_cast %8 : vector<8x128xf32> to vector<1x8x128xf32>
    %15 = arith.truncf %14 : vector<1x8x128xf32> to vector<1x8x128xbf16>
    "tpu.trace_start"() <{level = 10 : i32, message = "bij,bjd->bid"}> : () -> ()
    %cst_10 = arith.constant dense<0.000000e+00> : vector<1x8x128xf32>
    %16 = tpu.matmul %13, %15, %cst_10 {dimension_numbers = #tpu.dot_dimension_numbers<[2], [1], [1], [2], [0, 0, 0, 1, 1, 2], [0], [0]>} : vector<1x8x8xbf16>, vector<1x8x128xbf16>, vector<1x8x128xf32> -> vector<1x8x128xf32>
    "tpu.trace_stop"() : () -> ()
    %17 = vector.shape_cast %16 : vector<1x8x128xf32> to vector<8x128xf32>
    %c1 = arith.constant 1 : index
    %c0_11 = arith.constant 0 : index
    %18 = vector.load %arg5[%c1, %c0_11] : memref<8x128xf32, #tpu.memory_space<vmem>>, vector<1x128xf32>
    %19 = vector.broadcast %18 : vector<1x128xf32> to vector<8x128xf32>
    %20 = arith.addf %17, %19 : vector<8x128xf32>
    %cst_12 = arith.constant 0.000000e+00 : f32
    %21 = vector.broadcast %cst_12 : f32 to vector<8x128xf32>
    %22 = arith.maximumf %20, %21 : vector<8x128xf32>
    %23 = arith.truncf %22 : vector<8x128xf32> to vector<8x128xbf16>
    %c0_13 = arith.constant 0 : index
    %c0_14 = arith.constant 0 : index
    %24 = vector.load %arg4[%c0_13, %c0_14] : memref<128x128xbf16, #tpu.memory_space<vmem>>, vector<128x128xbf16>
    %cst_15 = arith.constant dense<0.000000e+00> : vector<8x128xf32>
    %25 = tpu.matmul %23, %24, %cst_15 {dimension_numbers = #tpu.dot_dimension_numbers<[1], [0], [0], [1], [0, 0, 1, 1], [], []>} : vector<8x128xbf16>, vector<128x128xbf16>, vector<8x128xf32> -> vector<8x128xf32>
    %c3 = arith.constant 3 : index
    %c0_16 = arith.constant 0 : index
    %26 = vector.load %arg5[%c3, %c0_16] : memref<8x128xf32, #tpu.memory_space<vmem>>, vector<1x128xf32>
    %27 = vector.broadcast %26 : vector<1x128xf32> to vector<8x128xf32>
    %28 = arith.addf %25, %27 : vector<8x128xf32>
    %29 = arith.addf %12, %28 : vector<8x128xf32>
    %30 = arith.negf %29 : vector<8x128xf32>
    %31 = math.exp %30 : vector<8x128xf32>
    %cst_17 = arith.constant 1.000000e+00 : f32
    %32 = vector.broadcast %cst_17 : f32 to vector<8x128xf32>
    %33 = arith.addf %32, %31 : vector<8x128xf32>
    %34 = arith.divf %32, %33 : vector<8x128xf32>
    %35 = arith.subf %12, %28 : vector<8x128xf32>
    %36 = arith.mulf %34, %35 : vector<8x128xf32>
    %37 = arith.addf %28, %36 : vector<8x128xf32>
    %c4 = arith.constant 4 : index
    %c0_18 = arith.constant 0 : index
    %38 = vector.load %arg5[%c4, %c0_18] : memref<8x128xf32, #tpu.memory_space<vmem>>, vector<1x128xf32>
    %39 = vector.broadcast %38 : vector<1x128xf32> to vector<8x128xf32>
    %40 = arith.mulf %37, %39 : vector<8x128xf32>
    %c5 = arith.constant 5 : index
    %c0_19 = arith.constant 0 : index
    %41 = vector.load %arg5[%c5, %c0_19] : memref<8x128xf32, #tpu.memory_space<vmem>>, vector<1x128xf32>
    %42 = vector.broadcast %41 : vector<1x128xf32> to vector<8x128xf32>
    %43 = arith.addf %40, %42 : vector<8x128xf32>
    %cst_20 = arith.constant 0.000000e+00 : f32
    %44 = vector.broadcast %cst_20 : f32 to vector<8x128xf32>
    %45 = arith.maximumf %43, %44 : vector<8x128xf32>
    %46 = vector.shape_cast %45 : vector<8x128xf32> to vector<1x8x128xf32>
    %c0_21 = arith.constant 0 : index
    %c0_22 = arith.constant 0 : index
    %c0_23 = arith.constant 0 : index
    %47 = vector.load %arg6[%c0_21, %c0_22, %c0_23] : memref<1x8x128xf32, #tpu.memory_space<vmem>>, vector<1x8x128xf32>
    tpu.vector_store %arg6[%c0_21, %c0_22, %c0_23], %46 {strides = array<i32>} : memref<1x8x128xf32, #tpu.memory_space<vmem>>, vector<1x8x128xf32>,
    return
  }
  func.func @transform_0(%arg0: i32) -> (i32, i32, i32) {
    %c0_i32 = arith.constant 0 : i32
    %c0_i32_0 = arith.constant 0 : i32
    %c0_i32_1 = arith.constant 0 : i32
    return %arg0, %c0_i32, %c0_i32_0 : i32, i32, i32
  }
  func.func @transform_1(%arg0: i32) -> (i32, i32, i32) {
    %c0_i32 = arith.constant 0 : i32
    %c0_i32_0 = arith.constant 0 : i32
    %c0_i32_1 = arith.constant 0 : i32
    return %arg0, %c0_i32, %c0_i32_0 : i32, i32, i32
  }
  func.func @transform_2(%arg0: i32) -> (i32, i32) {
    %c0_i32 = arith.constant 0 : i32
    %c0_i32_0 = arith.constant 0 : i32
    %c0_i32_1 = arith.constant 0 : i32
    return %c0_i32, %c0_i32_0 : i32, i32
  }
  func.func @transform_3(%arg0: i32) -> (i32, i32) {
    %c0_i32 = arith.constant 0 : i32
    %c0_i32_0 = arith.constant 0 : i32
    %c0_i32_1 = arith.constant 0 : i32
    return %c0_i32, %c0_i32_0 : i32, i32
  }
  func.func @transform_4(%arg0: i32) -> (i32, i32) {
    %c0_i32 = arith.constant 0 : i32
    %c0_i32_0 = arith.constant 0 : i32
    %c0_i32_1 = arith.constant 0 : i32
    return %c0_i32, %c0_i32_0 : i32, i32
  }
  func.func @transform_5(%arg0: i32) -> (i32, i32, i32) {
    %c0_i32 = arith.constant 0 : i32
    %c0_i32_0 = arith.constant 0 : i32
    %c0_i32_1 = arith.constant 0 : i32
    return %arg0, %c0_i32, %c0_i32_0 : i32, i32, i32
  }
}

module attributes {stable_mosaic.version = 11 : i64} {
  func.func @_resblock_kernel(%arg0: i32, %arg1: memref<1x8x16xf32, #tpu.memory_space<vmem>>, %arg2: memref<1x8x8xbf16, #tpu.memory_space<vmem>>, %arg3: memref<16x256xbf16, #tpu.memory_space<vmem>>, %arg4: memref<128x128xbf16, #tpu.memory_space<vmem>>, %arg5: memref<8x128xf32, #tpu.memory_space<vmem>>, %arg6: memref<1x8x128xf32, #tpu.memory_space<vmem>>) attributes {dimension_semantics = [#tpu.dimension_semantics<parallel>], iteration_bounds = array<i64: 2>, scalar_prefetch = 0 : i64, scratch_operands = 0 : i64, tpu.core_type = #tpu.core_type<tc>, window_params = [{transform_indices = @transform_0, window_bounds = array<i64: 1, 8, 16>}, {transform_indices = @transform_1, window_bounds = array<i64: 1, 8, 8>}, {pipeline_mode = #tpu.pipeline_mode<synchronous>, transform_indices = @transform_2, window_bounds = array<i64: 16, 256>}, {pipeline_mode = #tpu.pipeline_mode<synchronous>, transform_indices = @transform_3, window_bounds = array<i64: 128, 128>}, {pipeline_mode = #tpu.pipeline_mode<synchronous>, transform_indices = @transform_4, window_bounds = array<i64: 8, 128>}, {transform_indices = @transform_5, window_bounds = array<i64: 1, 8, 128>}]} {
    %c0 = arith.constant 0 : index
    %c0_0 = arith.constant 0 : index
    %c0_1 = arith.constant 0 : index
    %0 = vector.load %arg1[%c0, %c0_0, %c0_1] : memref<1x8x16xf32, #tpu.memory_space<vmem>>, vector<1x8x16xf32>
    %1 = vector.shape_cast %0 : vector<1x8x16xf32> to vector<8x16xf32>
    %2 = arith.truncf %1 : vector<8x16xf32> to vector<8x16xbf16>
    %c0_2 = arith.constant 0 : index
    %c0_3 = arith.constant 0 : index
    %3 = vector.load %arg3[%c0_2, %c0_3] : memref<16x256xbf16, #tpu.memory_space<vmem>>, vector<16x256xbf16>
    %cst = arith.constant dense<0.000000e+00> : vector<8x256xf32>
    %4 = tpu.matmul %2, %3, %cst {dimension_numbers = #tpu.dot_dimension_numbers<[1], [0], [0], [1], [0, 0, 1, 1], [], []>} : vector<8x16xbf16>, vector<16x256xbf16>, vector<8x256xf32> -> vector<8x256xf32>
    %5 = vector.extract_strided_slice %4 {offsets = [0, 0], sizes = [8, 128], strides = [1, 1]} : vector<8x256xf32> to vector<8x128xf32>
    %c0_4 = arith.constant 0 : index
    %c0_5 = arith.constant 0 : index
    %6 = vector.load %arg5[%c0_4, %c0_5] : memref<8x128xf32, #tpu.memory_space<vmem>>, vector<1x128xf32>
    %7 = vector.broadcast %6 : vector<1x128xf32> to vector<8x128xf32>
    %8 = arith.addf %5, %7 : vector<8x128xf32>
    %9 = vector.extract_strided_slice %4 {offsets = [0, 128], sizes = [8, 128], strides = [1, 1]} : vector<8x256xf32> to vector<8x128xf32>
    %c2 = arith.constant 2 : index
    %c0_6 = arith.constant 0 : index
    %10 = vector.load %arg5[%c2, %c0_6] : memref<8x128xf32, #tpu.memory_space<vmem>>, vector<1x128xf32>
    %11 = vector.broadcast %10 : vector<1x128xf32> to vector<8x128xf32>
    %12 = arith.addf %9, %11 : vector<8x128xf32>
    %c0_7 = arith.constant 0 : index
    %c0_8 = arith.constant 0 : index
    %c0_9 = arith.constant 0 : index
    %13 = vector.load %arg2[%c0_7, %c0_8, %c0_9] : memref<1x8x8xbf16, #tpu.memory_space<vmem>>, vector<1x8x8xbf16>
    %14 = vector.shape_cast %8 : vector<8x128xf32> to vector<1x8x128xf32>
    %15 = arith.truncf %14 : vector<1x8x128xf32> to vector<1x8x128xbf16>
    "tpu.trace_start"() <{level = 10 : i32, message = "bij,bjd->bid"}> : () -> ()
    %cst_10 = arith.constant dense<0.000000e+00> : vector<1x8x128xf32>
    %16 = tpu.matmul %13, %15, %cst_10 {dimension_numbers = #tpu.dot_dimension_numbers<[2], [1], [1], [2], [0, 0, 0, 1, 1, 2], [0], [0]>} : vector<1x8x8xbf16>, vector<1x8x128xbf16>, vector<1x8x128xf32> -> vector<1x8x128xf32>
    "tpu.trace_stop"() : () -> ()
    %17 = vector.shape_cast %16 : vector<1x8x128xf32> to vector<8x128xf32>
    %c1 = arith.constant 1 : index
    %c0_11 = arith.constant 0 : index
    %18 = vector.load %arg5[%c1, %c0_11] : memref<8x128xf32, #tpu.memory_space<vmem>>, vector<1x128xf32>
    %19 = vector.broadcast %18 : vector<1x128xf32> to vector<8x128xf32>
    %20 = arith.addf %17, %19 : vector<8x128xf32>
    %cst_12 = arith.constant 0.000000e+00 : f32
    %21 = vector.broadcast %cst_12 : f32 to vector<8x128xf32>
    %22 = arith.maximumf %20, %21 : vector<8x128xf32>
    %23 = arith.truncf %22 : vector<8x128xf32> to vector<8x128xbf16>
    %c0_13 = arith.constant 0 : index
    %c0_14 = arith.constant 0 : index
    %24 = vector.load %arg4[%c0_13, %c0_14] : memref<128x128xbf16, #tpu.memory_space<vmem>>, vector<128x128xbf16>
    %cst_15 = arith.constant dense<0.000000e+00> : vector<8x128xf32>
    %25 = tpu.matmul %23, %24, %cst_15 {dimension_numbers = #tpu.dot_dimension_numbers<[1], [0], [0], [1], [0, 0, 1, 1], [], []>} : vector<8x128xbf16>, vector<128x128xbf16>, vector<8x128xf32> -> vector<8x128xf32>
    %c3 = arith.constant 3 : index
    %c0_16 = arith.constant 0 : index
    %26 = vector.load %arg5[%c3, %c0_16] : memref<8x128xf32, #tpu.memory_space<vmem>>, vector<1x128xf32>
    %27 = vector.broadcast %26 : vector<1x128xf32> to vector<8x128xf32>
    %28 = arith.addf %25, %27 : vector<8x128xf32>
    %29 = arith.addf %12, %28 : vector<8x128xf32>
    %30 = arith.negf %29 : vector<8x128xf32>
    %31 = math.exp %30 : vector<8x128xf32>
    %cst_17 = arith.constant 1.000000e+00 : f32
    %32 = vector.broadcast %cst_17 : f32 to vector<8x128xf32>
    %33 = arith.addf %32, %31 : vector<8x128xf32>
    %34 = arith.divf %32, %33 : vector<8x128xf32>
    %35 = arith.subf %12, %28 : vector<8x128xf32>
    %36 = arith.mulf %34, %35 : vector<8x128xf32>
    %37 = arith.addf %28, %36 : vector<8x128xf32>
    %c4 = arith.constant 4 : index
    %c0_18 = arith.constant 0 : index
    %38 = vector.load %arg5[%c4, %c0_18] : memref<8x128xf32, #tpu.memory_space<vmem>>, vector<1x128xf32>
    %39 = vector.broadcast %38 : vector<1x128xf32> to vector<8x128xf32>
    %40 = arith.mulf %37, %39 : vector<8x128xf32>
    %c5 = arith.constant 5 : index
    %c0_19 = arith.constant 0 : index
    %41 = vector.load %arg5[%c5, %c0_19] : memref<8x128xf32, #tpu.memory_space<vmem>>, vector<1x128xf32>
    %42 = vector.broadcast %41 : vector<1x128xf32> to vector<8x128xf32>
    %43 = arith.addf %40, %42 : vector<8x128xf32>
    %cst_20 = arith.constant 0.000000e+00 : f32
    %44 = vector.broadcast %cst_20 : f32 to vector<8x128xf32>
    %45 = arith.maximumf %43, %44 : vector<8x128xf32>
    %46 = vector.shape_cast %45 : vector<8x128xf32> to vector<1x8x128xf32>
    %c0_21 = arith.constant 0 : index
    %c0_22 = arith.constant 0 : index
    %c0_23 = arith.constant 0 : index
    %47 = vector.load %arg6[%c0_21, %c0_22, %c0_23] : memref<1x8x128xf32, #tpu.memory_space<vmem>>, vector<1x8x128xf32>
    tpu.vector_store %arg6[%c0_21, %c0_22, %c0_23], %46 {strides = array<i32>} : memref<1x8x128xf32, #tpu.memory_space<vmem>>, vector<1x8x128xf32>,
    return
  }
  func.func @transform_0(%arg0: i32) -> (i32, i32, i32) {
    %c0_i32 = arith.constant 0 : i32
    %c0_i32_0 = arith.constant 0 : i32
    %c0_i32_1 = arith.constant 0 : i32
    return %arg0, %c0_i32, %c0_i32_0 : i32, i32, i32
  }
  func.func @transform_1(%arg0: i32) -> (i32, i32, i32) {
    %c0_i32 = arith.constant 0 : i32
    %c0_i32_0 = arith.constant 0 : i32
    %c0_i32_1 = arith.constant 0 : i32
    return %arg0, %c0_i32, %c0_i32_0 : i32, i32, i32
  }
  func.func @transform_2(%arg0: i32) -> (i32, i32) {
    %c0_i32 = arith.constant 0 : i32
    %c0_i32_0 = arith.constant 0 : i32
    %c0_i32_1 = arith.constant 0 : i32
    return %c0_i32, %c0_i32_0 : i32, i32
  }
  func.func @transform_3(%arg0: i32) -> (i32, i32) {
    %c0_i32 = arith.constant 0 : i32
    %c0_i32_0 = arith.constant 0 : i32
    %c0_i32_1 = arith.constant 0 : i32
    return %c0_i32, %c0_i32_0 : i32, i32
  }
  func.func @transform_4(%arg0: i32) -> (i32, i32) {
    %c0_i32 = arith.constant 0 : i32
    %c0_i32_0 = arith.constant 0 : i32
    %c0_i32_1 = arith.constant 0 : i32
    return %c0_i32, %c0_i32_0 : i32, i32
  }
  func.func @transform_5(%arg0: i32) -> (i32, i32, i32) {
    %c0_i32 = arith.constant 0 : i32
    %c0_i32_0 = arith.constant 0 : i32
    %c0_i32_1 = arith.constant 0 : i32
    return %arg0, %c0_i32, %c0_i32_0 : i32, i32, i32
  }
}

module attributes {stable_mosaic.version = 11 : i64} {
  func.func @_readout_kernel(%arg0: i32, %arg1: memref<2x8x128xf32, #tpu.memory_space<vmem>>, %arg2: memref<128x128xbf16, #tpu.memory_space<vmem>>, %arg3: memref<1x128xf32, #tpu.memory_space<vmem>>, %arg4: memref<2x128xf32, #tpu.memory_space<vmem>>) attributes {dimension_semantics = [#tpu.dimension_semantics<arbitrary>], iteration_bounds = array<i64: 1>, scalar_prefetch = 0 : i64, scratch_operands = 0 : i64, tpu.core_type = #tpu.core_type<tc>, window_params = [{pipeline_mode = #tpu.pipeline_mode<synchronous>, transform_indices = @transform_0, window_bounds = array<i64: 2, 8, 128>}, {pipeline_mode = #tpu.pipeline_mode<synchronous>, transform_indices = @transform_1, window_bounds = array<i64: 128, 128>}, {pipeline_mode = #tpu.pipeline_mode<synchronous>, transform_indices = @transform_2, window_bounds = array<i64: 1, 128>}, {pipeline_mode = #tpu.pipeline_mode<synchronous>, transform_indices = @transform_3, window_bounds = array<i64: 2, 128>}]} {
    %c0 = arith.constant 0 : index
    %c0_0 = arith.constant 0 : index
    %c0_1 = arith.constant 0 : index
    %0 = vector.load %arg1[%c0, %c0_0, %c0_1] : memref<2x8x128xf32, #tpu.memory_space<vmem>>, vector<2x8x128xf32>
    %cst = arith.constant dense<0.000000e+00> : vector<2x128xf32>
    %1 = vector.multi_reduction <add>, %0, %cst [1] : vector<2x8x128xf32> to vector<2x128xf32>
    %cst_2 = arith.constant 8.000000e+00 : f32
    %2 = vector.broadcast %cst_2 : f32 to vector<2x128xf32>
    %3 = arith.divf %1, %2 : vector<2x128xf32>
    %4 = arith.truncf %3 : vector<2x128xf32> to vector<2x128xbf16>
    %c0_3 = arith.constant 0 : index
    %c0_4 = arith.constant 0 : index
    %5 = vector.load %arg2[%c0_3, %c0_4] : memref<128x128xbf16, #tpu.memory_space<vmem>>, vector<128x128xbf16>
    %cst_5 = arith.constant dense<0.000000e+00> : vector<2x128xf32>
    %6 = tpu.matmul %4, %5, %cst_5 {dimension_numbers = #tpu.dot_dimension_numbers<[1], [0], [0], [1], [0, 0, 1, 1], [], []>} : vector<2x128xbf16>, vector<128x128xbf16>, vector<2x128xf32> -> vector<2x128xf32>
    %c0_6 = arith.constant 0 : index
    %c0_7 = arith.constant 0 : index
    %7 = vector.load %arg3[%c0_6, %c0_7] : memref<1x128xf32, #tpu.memory_space<vmem>>, vector<1x128xf32>
    %8 = vector.broadcast %7 : vector<1x128xf32> to vector<2x128xf32>
    %9 = arith.addf %6, %8 : vector<2x128xf32>
    %c0_8 = arith.constant 0 : index
    %c0_9 = arith.constant 0 : index
    %10 = vector.load %arg4[%c0_8, %c0_9] : memref<2x128xf32, #tpu.memory_space<vmem>>, vector<2x128xf32>
    tpu.vector_store %arg4[%c0_8, %c0_9], %9 {strides = array<i32>} : memref<2x128xf32, #tpu.memory_space<vmem>>, vector<2x128xf32>,
    return
  }
  func.func @transform_0(%arg0: i32) -> (i32, i32, i32) {
    %c0_i32 = arith.constant 0 : i32
    %c0_i32_0 = arith.constant 0 : i32
    %c0_i32_1 = arith.constant 0 : i32
    %c0_i32_2 = arith.constant 0 : i32
    return %c0_i32, %c0_i32_0, %c0_i32_1 : i32, i32, i32
  }
  func.func @transform_1(%arg0: i32) -> (i32, i32) {
    %c0_i32 = arith.constant 0 : i32
    %c0_i32_0 = arith.constant 0 : i32
    %c0_i32_1 = arith.constant 0 : i32
    return %c0_i32, %c0_i32_0 : i32, i32
  }
  func.func @transform_2(%arg0: i32) -> (i32, i32) {
    %c0_i32 = arith.constant 0 : i32
    %c0_i32_0 = arith.constant 0 : i32
    %c0_i32_1 = arith.constant 0 : i32
    return %c0_i32, %c0_i32_0 : i32, i32
  }
  func.func @transform_3(%arg0: i32) -> (i32, i32) {
    %c0_i32 = arith.constant 0 : i32
    %c0_i32_0 = arith.constant 0 : i32
    %c0_i32_1 = arith.constant 0 : i32
    return %c0_i32, %c0_i32_0 : i32, i32
  }
}

</mosaic_0001>

<llo_original>
// kernel: mul.26
$region0: #{mul.26}
  #allocation0 [shape = 's32[1]{0}', space=sflag, size = 0x4, scoped, tag = 'scoped memory for mul.26']
  %s0 = inlined_call_operand.vmem [shape: f32[32], index: 0, kind: input, shape index: {}]
  %s1 = inlined_call_operand.vmem [shape: f32[32], index: 1, kind: input, shape index: {}]
  %s2 = inlined_call_operand.vmem [shape: f32[32], index: 2, kind: output, shape index: {}]
  %v3 = vld [vmem:[%s0] sm:$0x1]
  %v4 = vld [vmem:[%s1] sm:$0x1]
  %5 = xla_tuple %v3, %v4
  %6 = xla_tuple %5
  %v7 = vmul.f32 %v3, %v4
  %8 = xla_tuple %v7
  %9 = vst [vmem:[%s2] sm:$0x1] %v7

// kernel: _lambda_.5
$region0: #{_lambda_.5}
  #allocation0 [shape = 'u32[]', space=smem, size = 0x4, offset = 0x4, fixed_abs, tag = 'smem constant byte address 0x4 - core index']
  #allocation1 [shape = 'u32[144,128]{1,0:T(1,128)}', space=vmem, size = 0x12000, scoped, tag = 'internal scratch']
  %s0 = inlined_call_operand.vmem [shape: f32[2,8,128], index: 0, kind: input, shape index: {}]
  %s1 = inlined_call_operand.vmem [shape: bf16[128,128], index: 1, kind: input, shape index: {}]
  %s2 = inlined_call_operand.vmem [shape: f32[1,128], index: 2, kind: input, shape index: {}]
  %s3 = inlined_call_operand.hbm [shape: f32[2,128], index: 3, kind: output, shape index: {}]
  %s4 = sld [smem:[#allocation0]]
  $region22: #{_lambda_.5} parent=0
    _
  %s6 = ssub.s32 1, %s4
  %s7 = scalar_select 0, %s6, %s4
  $region1: #{_lambda_.5} parent=0
    #allocation2 [shape = 'u8[1024]{0}', space=vmem, size = 0x400, scoped, tag = 'output window, operand 0, single buffered']
    #allocation3 [shape = 's32[1]{0}', space=sflag, size = 0x4, scoped, tag = 'scoped memory for _lambda_.5']
    %8 = vsyncpa [#allocation3], 0
    // Predicated region
    $region2: #{_lambda_.5} parent=1 // pred_check
      _
    $region3: #{_lambda_.5} parent=1 // pred_check_branch
      %10 = sbr.rel (0) target = $region5
    $region4: #{_lambda_.5} parent=1 // pred_region
      _
    $region5: #{_lambda_.5} parent=1 // pred_fallthru
      _
    // Predicated region
    $region6: #{_lambda_.5} parent=1 // pred_check
      _
    $region7: #{_lambda_.5} parent=1 // pred_check_branch
      %12 = sbr.rel (0) target = $region9
    $region8: #{_lambda_.5} parent=1 // pred_region
      _
    $region9: #{_lambda_.5} parent=1 // pred_fallthru
      _
    // Predicated region
    $region10: #{_lambda_.5} parent=1 // pred_check
      _
    $region11: #{_lambda_.5} parent=1 // pred_check_branch
      %14 = sbr.rel (0) target = $region13
    $region12: #{_lambda_.5} parent=1 // pred_region
      _
    $region13: #{_lambda_.5} parent=1 // pred_fallthru
      _
    %v16 = vld [vmem:[%s0] sm:$0xff]
    %v17 = vld [vmem:[%s0 + $0x8] sm:$0xff]
    %v18 = vrot.slane %v16, 4
    %v19 = vadd.f32 %v16, %v18
    %v20 = vrot.slane %v19, 2
    %v21 = vadd.f32 %v19, %v20
    %v22 = vrot.slane %v21, 1
    %v23 = vadd.f32 %v21, %v22
    %v24 = vrot.slane %v17, 4
    %v25 = vadd.f32 %v17, %v24
    %v26 = vrot.slane %v25, 2
    %v27 = vadd.f32 %v25, %v26
    %v28 = vrot.slane %v27, 1
    %v29 = vadd.f32 %v27, %v28
    %v30 = vrcp.pop 8.0
    %v31 = vmul.f32 %v23, %v30
    %v32 = vmul.f32 %v29, %v30
    %v33 = vpack.c.bf16 %v31, %v31
    %v34 = vpack.c.bf16 %v32, %v32
    %v35 = vld [vmem:[%s1] sm:$0xf]
    %v36 = vld [vmem:[%s1 + $0x4] sm:$0xf]
    %v37 = vld [vmem:[%s1 + $0x8] sm:$0xf]
    %v38 = vld [vmem:[%s1 + $0xc] sm:$0xf]
    %v39 = vld [vmem:[%s1 + $0x10] sm:$0xf]
    %v40 = vld [vmem:[%s1 + $0x14] sm:$0xf]
    %v41 = vld [vmem:[%s1 + $0x18] sm:$0xf]
    %v42 = vld [vmem:[%s1 + $0x1c] sm:$0xf]
    %v43 = vld [vmem:[%s1 + $0x20] sm:$0xf]
    %v44 = vld [vmem:[%s1 + $0x24] sm:$0xf]
    %v45 = vld [vmem:[%s1 + $0x28] sm:$0xf]
    %v46 = vld [vmem:[%s1 + $0x2c] sm:$0xf]
    %v47 = vld [vmem:[%s1 + $0x30] sm:$0xf]
    %v48 = vld [vmem:[%s1 + $0x34] sm:$0xf]
    %v49 = vld [vmem:[%s1 + $0x38] sm:$0xf]
    %v50 = vld [vmem:[%s1 + $0x3c] sm:$0xf]
    %v51 = vld [vmem:[%s2] sm:$0x1]
    %v53 = vlaneseq
    %v54 = vshrl.u32 %v53, 7
    %v55 = vsub.s32 0, %v54
    %v56 = vrot.slane %v51, %v55
    %v60 = vunpack.c.l.b16 %v33
    %v61 = vunpack.c.l.b16 %v34
    %vm62 = vcmask 1041409
    %v63 = vsel %vm62, %v61, %v60
    %v64 = vpack.c.b16 %v63, %v63
    %v82 = vunpack.c.l.b16 %v35
    %v83 = vunpack.c.l.b16 %v36
    %v84 = vunpack.c.l.b16 %v37
    %v85 = vunpack.c.l.b16 %v38
    %v86 = vunpack.c.l.b16 %v39
    %v87 = vunpack.c.l.b16 %v40
    %v88 = vunpack.c.l.b16 %v41
    %v89 = vunpack.c.l.b16 %v42
    %v90 = vunpack.c.l.b16 %v43
    %v91 = vunpack.c.l.b16 %v44
    %v92 = vunpack.c.l.b16 %v45
    %v93 = vunpack.c.l.b16 %v46
    %v94 = vunpack.c.l.b16 %v47
    %v95 = vunpack.c.l.b16 %v48
    %v96 = vunpack.c.l.b16 %v49
    %v97 = vunpack.c.l.b16 %v50
    %v98 = vpack.c.b16 %v83, %v82
    %v99 = vpack.c.b16 %v85, %v84
    %v100 = vpack.c.b16 %v87, %v86
    %v101 = vpack.c.b16 %v89, %v88
    %v102 = vpack.c.b16 %v91, %v90
    %v103 = vpack.c.b16 %v93, %v92
    %v104 = vpack.c.b16 %v95, %v94
    %v105 = vpack.c.b16 %v97, %v96
    %114 = vmatprep.subr.bf16.mxu0 0
    %115 = vmatpush1.bf16.msra.mxu0 %v98
    %116 = vmatprep.subr.bf16.mxu0 0
    %117 = vmatpush1.bf16.msra.mxu0 %v99
    %118 = vmatprep.subr.bf16.mxu0 0
    %119 = vmatpush1.bf16.msra.mxu0 %v100
    %120 = vmatprep.subr.bf16.mxu0 0
    %121 = vmatpush1.bf16.msra.mxu0 %v101
    %122 = vmatprep.subr.bf16.mxu0 0
    %123 = vmatpush1.bf16.msra.mxu0 %v102
    %124 = vmatprep.subr.bf16.mxu0 0
    %125 = vmatpush1.bf16.msra.mxu0 %v103
    %126 = vmatprep.subr.bf16.mxu0 0
    %127 = vmatpush1.bf16.msra.mxu0 %v104
    %128 = vmatprep.subr.bf16.mxu0 0
    %129 = vmatpush1.bf16.msra.mxu0 %v105
    %130 = vmatprep.subr.bf16.mxu0 0
    %131 = vmatpush1.bf16.msra.mxu0 0
    %132 = vmatprep.subr.bf16.mxu0 0
    %133 = vmatpush1.bf16.msra.mxu0 0
    %134 = vmatprep.subr.bf16.mxu0 0
    %135 = vmatpush1.bf16.msra.mxu0 0
    %136 = vmatprep.subr.bf16.mxu0 0
    %137 = vmatpush1.bf16.msra.mxu0 0
    %138 = vmatprep.subr.bf16.mxu0 0
    %139 = vmatpush1.bf16.msra.mxu0 0
    %140 = vmatprep.subr.bf16.mxu0 0
    %141 = vmatpush1.bf16.msra.mxu0 0
    %142 = vmatprep.subr.bf16.mxu0 0
    %143 = vmatpush1.bf16.msra.mxu0 0
    %144 = vmatprep.subr.bf16.mxu0 0
    %145 = vmatpush1.bf16.msra.mxu0 0
    %146 = vmatprep.mubr.bf16.mxu0 0
    %147 = vmatmul.mubr.bf16.gmra.mrb[0].mxu0 %v64
    %v148 = vpop.f32.mrb[0].mxu0
    %v149 = vadd.f32 %v56, %v148
    %v150 = vpop.f32.mrb[0].mxu0
    %v151 = vpop.f32.mrb[0].mxu0
    %v152 = vpop.f32.mrb[0].mxu0
    %153 = vdwg.mxu0
    %154 = vst [vmem:[#allocation2] sm:$0x3] %v149
    // Predicated region
    $region14: #{_lambda_.5} parent=1 // pred_check
      _
    $region15: #{_lambda_.5} parent=1 // pred_check_branch
      %156 = sbr.rel (0) target = $region17
    $region16: #{_lambda_.5} parent=1 // pred_region
      %s158 = ssub.s32 32, 32
      %159 = vsyncadd [#allocation3], %s158
      %s161 = sshll.u32 [#allocation2], 4
      %s162 = int_to_ptr.vmem [resolvable:$true] %s161
      %164 = dma.vmem_to_hbm [thread:$0]  %s162, 32, %s3, [#allocation3]
    $region17: #{_lambda_.5} parent=1 // pred_fallthru
      _
    // Predicated region
    $region18: #{_lambda_.5} parent=1 // pred_check
      _
    $region19: #{_lambda_.5} parent=1 // pred_check_branch
      %166 = sbr.rel (0) target = $region21
    $region20: #{_lambda_.5} parent=1 // pred_region
      %167 = dma.done [#allocation3], 32
    $region21: #{_lambda_.5} parent=1 // pred_fallthru
      _
    %168 = vsyncpa [#allocation3], 1

// kernel: _lambda_.4
$region0: #{_lambda_.4}
  #allocation0 [shape = 'u32[]', space=smem, size = 0x4, offset = 0x4, fixed_abs, tag = 'smem constant byte address 0x4 - core index']
  #allocation1 [shape = 'u32[144,128]{1,0:T(1,128)}', space=vmem, size = 0x12000, scoped, tag = 'internal scratch']
  %s0 = inlined_call_operand.vmem [shape: f32[2,8,128], index: 0, kind: input, shape index: {}]
  %s1 = inlined_call_operand.vmem [shape: bf16[2,8,8], index: 1, kind: input, shape index: {}]
  %s2 = inlined_call_operand.vmem [shape: bf16[128,256], index: 2, kind: input, shape index: {}]
  %s3 = inlined_call_operand.vmem [shape: bf16[128,128], index: 3, kind: input, shape index: {}]
  %s4 = inlined_call_operand.vmem [shape: f32[8,128], index: 4, kind: input, shape index: {}]
  %s5 = inlined_call_operand.vmem [shape: f32[2,8,128], index: 5, kind: output, shape index: {}]
  %s6 = sld [smem:[#allocation0]]
  $region53: #{_lambda_.4} parent=0
    _
  %s8 = ssub.s32 1, %s6
  %s9 = scalar_select 0, %s8, %s6
  loop: start=0, step=1, limit=4
  $region2: #{_lambda_.4} parent=0 // loop_pre_header
    _
  $region3: #{_lambda_.4} parent=0 // loop_header
    %s11 = sphi 0, %s15
    %p12 = scmp.ge.s32.totalorder %s11, 4
    %s21 = sphi 0, %s23
    %s24 = sphi 0, %s21
    %s25 = sphi 0, %s24
    %s41 = sphi 0, %s25
    %s47 = sphi 0, %s49
    %s50 = sphi 0, %s47
    %s51 = sphi 0, %s50
    %s67 = sphi 0, %s51
    %s71 = sphi 0, %s71
    %s73 = sphi 0, %s71
    %s74 = sphi 0, %s73
    %s88 = sphi 0, %s74
    %s92 = sphi 0, %s92
    %s94 = sphi 0, %s92
    %s95 = sphi 0, %s94
    %s109 = sphi 0, %s95
    %s113 = sphi 0, %s113
    %s115 = sphi 0, %s113
    %s116 = sphi 0, %s115
    %s130 = sphi 0, %s116
    %s136 = sphi 0, %s138
    %s139 = sphi 0, %s136
    %s140 = sphi 0, %s139
    %s156 = sphi 0, %s140
  $region4: #{_lambda_.4} parent=0 // loop_header_branch
    %14 = sbr.rel (%p12) target = $region8
  $region5: #{_lambda_.4} parent=0 // loop_body
    %s16 = ssub.s32 %s11, 1
    %s17 = ssub.s32 %s11, 2
    %s18 = sadd.s32 %s11, 1
    %s19 = ssub.s32 %s11, %s18
    %p20 = scmp.eq.s32.totalorder %s19, 0
    %s22 = sadd.s32 %s21, 1
    %s23 = scalar_select %p20, %s21, %s22
    %p26 = pneg %p20
    %p27 = scmp.eq.s32.totalorder %s11, 1
    %p28 = por %p26, %p27
    %p29 = scmp.ne.s32.totalorder %s21, %s24
    %p30 = scmp.eq.s32.totalorder %s11, 0
    %p31 = por %p29, %p30
    %p32 = scmp.ne.s32.totalorder %s21, %s24
    %p33 = scmp.eq.s32.totalorder %s16, 1
    %p34 = por %p32, %p33
    %p35 = scmp.ne.s32.totalorder %s24, %s25
    %p36 = scmp.eq.s32.totalorder %s16, 0
    %p37 = por %p35, %p36
    %p38 = scmp.ne.s32.totalorder %s24, %s25
    %p39 = scmp.eq.s32.totalorder %s17, 1
    %p40 = por %p38, %p39
    %p42 = scmp.ne.s32.totalorder %s25, %s41
    %p43 = scmp.eq.s32.totalorder %s17, 0
    %p44 = por %p42, %p43
    %s45 = ssub.s32 %s11, %s18
    %p46 = scmp.eq.s32.totalorder %s45, 0
    %s48 = sadd.s32 %s47, 1
    %s49 = scalar_select %p46, %s47, %s48
    %p52 = pneg %p46
    %p53 = scmp.eq.s32.totalorder %s11, 1
    %p54 = por %p52, %p53
    %p55 = scmp.ne.s32.totalorder %s47, %s50
    %p56 = scmp.eq.s32.totalorder %s11, 0
    %p57 = por %p55, %p56
    %p58 = scmp.ne.s32.totalorder %s47, %s50
    %p59 = scmp.eq.s32.totalorder %s16, 1
    %p60 = por %p58, %p59
    %p61 = scmp.ne.s32.totalorder %s50, %s51
    %p62 = scmp.eq.s32.totalorder %s16, 0
    %p63 = por %p61, %p62
    %p64 = scmp.ne.s32.totalorder %s50, %s51
    %p65 = scmp.eq.s32.totalorder %s17, 1
    %p66 = por %p64, %p65
    %p68 = scmp.ne.s32.totalorder %s51, %s67
    %p69 = scmp.eq.s32.totalorder %s17, 0
    %p70 = por %p68, %p69
    %s72 = sadd.s32 %s71, 1
    %p75 = scmp.eq.s32.totalorder %s11, 1
    %p76 = scmp.ne.s32.totalorder %s71, %s73
    %p77 = scmp.eq.s32.totalorder %s11, 0
    %p78 = por %p76, %p77
    %p79 = scmp.ne.s32.totalorder %s71, %s73
    %p80 = scmp.eq.s32.totalorder %s16, 1
    %p81 = por %p79, %p80
    %p82 = scmp.ne.s32.totalorder %s73, %s74
    %p83 = scmp.eq.s32.totalorder %s16, 0
    %p84 = por %p82, %p83
    %p85 = scmp.ne.s32.totalorder %s73, %s74
    %p86 = scmp.eq.s32.totalorder %s17, 1
    %p87 = por %p85, %p86
    %p89 = scmp.ne.s32.totalorder %s74, %s88
    %p90 = scmp.eq.s32.totalorder %s17, 0
    %p91 = por %p89, %p90
    %s93 = sadd.s32 %s92, 1
    %p96 = scmp.eq.s32.totalorder %s11, 1
    %p97 = scmp.ne.s32.totalorder %s92, %s94
    %p98 = scmp.eq.s32.totalorder %s11, 0
    %p99 = por %p97, %p98
    %p100 = scmp.ne.s32.totalorder %s92, %s94
    %p101 = scmp.eq.s32.totalorder %s16, 1
    %p102 = por %p100, %p101
    %p103 = scmp.ne.s32.totalorder %s94, %s95
    %p104 = scmp.eq.s32.totalorder %s16, 0
    %p105 = por %p103, %p104
    %p106 = scmp.ne.s32.totalorder %s94, %s95
    %p107 = scmp.eq.s32.totalorder %s17, 1
    %p108 = por %p106, %p107
    %p110 = scmp.ne.s32.totalorder %s95, %s109
    %p111 = scmp.eq.s32.totalorder %s17, 0
    %p112 = por %p110, %p111
    %s114 = sadd.s32 %s113, 1
    %p117 = scmp.eq.s32.totalorder %s11, 1
    %p118 = scmp.ne.s32.totalorder %s113, %s115
    %p119 = scmp.eq.s32.totalorder %s11, 0
    %p120 = por %p118, %p119
    %p121 = scmp.ne.s32.totalorder %s113, %s115
    %p122 = scmp.eq.s32.totalorder %s16, 1
    %p123 = por %p121, %p122
    %p124 = scmp.ne.s32.totalorder %s115, %s116
    %p125 = scmp.eq.s32.totalorder %s16, 0
    %p126 = por %p124, %p125
    %p127 = scmp.ne.s32.totalorder %s115, %s116
    %p128 = scmp.eq.s32.totalorder %s17, 1
    %p129 = por %p127, %p128
    %p131 = scmp.ne.s32.totalorder %s116, %s130
    %p132 = scmp.eq.s32.totalorder %s17, 0
    %p133 = por %p131, %p132
    %s134 = ssub.s32 %s11, %s18
    %p135 = scmp.eq.s32.totalorder %s134, 0
    %s137 = sadd.s32 %s136, 1
    %s138 = scalar_select %p135, %s136, %s137
    %p141 = pneg %p135
    %p142 = scmp.eq.s32.totalorder %s11, 1
    %p143 = por %p141, %p142
    %p144 = scmp.ne.s32.totalorder %s136, %s139
    %p145 = scmp.eq.s32.totalorder %s11, 0
    %p146 = por %p144, %p145
    %p147 = scmp.ne.s32.totalorder %s136, %s139
    %p148 = scmp.eq.s32.totalorder %s16, 1
    %p149 = por %p147, %p148
    %p150 = scmp.ne.s32.totalorder %s139, %s140
    %p151 = scmp.eq.s32.totalorder %s16, 0
    %p152 = por %p150, %p151
    %p153 = scmp.ne.s32.totalorder %s139, %s140
    %p154 = scmp.eq.s32.totalorder %s17, 1
    %p155 = por %p153, %p154
    %p157 = scmp.ne.s32.totalorder %s140, %s156
    %p158 = scmp.eq.s32.totalorder %s17, 0
    %p159 = por %p157, %p158
    %p160 = scmp.le.s32.totalorder 1, %s11
    %p161 = scmp.lt.s32.totalorder %s11, 3
    %p162 = pnand %p160, %p161
    %p163 = pneg %p162
    // Predicated region
    $region9: #{_lambda_.4} parent=5 // pred_check
      _
    $region10: #{_lambda_.4} parent=5 // pred_check_branch
      %165 = sbr.rel (%p162) target = $region12
    $region11: #{_lambda_.4} parent=5 // pred_region
      %s166 = ssub.s32 %s11, 1
      // Predicated region
      $region13: #{_lambda_.4} parent=11 // pred_check
        %p167 = pneg %p84
      $region14: #{_lambda_.4} parent=11 // pred_check_branch
        %169 = sbr.rel (%p167) target = $region16
      $region15: #{_lambda_.4} parent=11 // pred_region
        _
      $region16: #{_lambda_.4} parent=11 // pred_fallthru
        _
      // Predicated region
      $region17: #{_lambda_.4} parent=11 // pred_check
        %p170 = pneg %p105
      $region18: #{_lambda_.4} parent=11 // pred_check_branch
        %172 = sbr.rel (%p170) target = $region20
      $region19: #{_lambda_.4} parent=11 // pred_region
        _
      $region20: #{_lambda_.4} parent=11 // pred_fallthru
        _
      // Predicated region
      $region21: #{_lambda_.4} parent=11 // pred_check
        %p173 = pneg %p126
      $region22: #{_lambda_.4} parent=11 // pred_check_branch
        %175 = sbr.rel (%p173) target = $region24
      $region23: #{_lambda_.4} parent=11 // pred_region
        _
      $region24: #{_lambda_.4} parent=11 // pred_fallthru
        _
    $region12: #{_lambda_.4} parent=5 // pred_fallthru
      _
    %p176 = scmp.lt.s32.totalorder %s11, 2
    // Predicated region
    $region25: #{_lambda_.4} parent=5 // pred_check
      %p177 = pneg %p176
    $region26: #{_lambda_.4} parent=5 // pred_check_branch
      %179 = sbr.rel (%p177) target = $region28
    $region27: #{_lambda_.4} parent=5 // pred_region
      // Predicated region
      $region29: #{_lambda_.4} parent=27 // pred_check
        %p180 = pneg %p31
      $region30: #{_lambda_.4} parent=27 // pred_check_branch
        %182 = sbr.rel (%p180) target = $region32
      $region31: #{_lambda_.4} parent=27 // pred_region
        %p183 = scmp.lt.s32.totalorder %s11, 1
        %s184 = scalar_select %p183, %s11, 1
        %s185 = smul.addr %s184, 8
        %s186 = scalar_lea.vmem %s0, %s185
      $region32: #{_lambda_.4} parent=27 // pred_fallthru
        _
      // Predicated region
      $region33: #{_lambda_.4} parent=27 // pred_check
        %p187 = pneg %p57
      $region34: #{_lambda_.4} parent=27 // pred_check_branch
        %189 = sbr.rel (%p187) target = $region36
      $region35: #{_lambda_.4} parent=27 // pred_region
        %p190 = scmp.lt.s32.totalorder %s11, 1
        %s191 = scalar_select %p190, %s11, 1
        %s192 = smul.addr %s191, 4
        %s193 = scalar_lea.vmem %s1, %s192
      $region36: #{_lambda_.4} parent=27 // pred_fallthru
        _
    $region28: #{_lambda_.4} parent=5 // pred_fallthru
      _
    %p194 = scmp.le.s32.totalorder 1, %s11
    %p195 = scmp.lt.s32.totalorder %s11, 3
    %p196 = pnand %p194, %p195
    %p197 = pneg %p196
    // Predicated region
    $region37: #{_lambda_.4} parent=5 // pred_check
      _
    $region38: #{_lambda_.4} parent=5 // pred_check_branch
      %199 = sbr.rel (%p196) target = $region40
    $region39: #{_lambda_.4} parent=5 // pred_region
      %s200 = ssub.s32 %s11, 1
      %p201 = scmp.lt.s32.totalorder %s16, 1
      %s202 = scalar_select %p201, %s16, 1
      %s203 = smul.addr %s202, 8
      %s204 = scalar_lea.vmem %s0, %s203
      %p205 = pneg %p37
      %p206 = pneg %p34
      %p207 = scmp.lt.s32.totalorder %s16, 1
      %s208 = scalar_select %p207, %s16, 1
      %s209 = smul.addr %s208, 4
      %s210 = scalar_lea.vmem %s1, %s209
      %p211 = pneg %p63
      %p212 = pneg %p60
      %p213 = pneg %p84
      %p214 = pneg %p81
      %p215 = pneg %p105
      %p216 = pneg %p102
      %p217 = pneg %p126
      %p218 = pneg %p123
      %p219 = pneg %p152
      %p220 = pneg %p149
      %p221 = scmp.lt.s32.totalorder %s16, 1
      %s222 = scalar_select %p221, %s16, 1
      %s223 = smul.addr %s222, 8
      %s224 = scalar_lea.vmem %s5, %s223
      %p225 = scmp.lt.s32.totalorder %s16, 1
      %s226 = scalar_select %p225, %s16, 1
      %s227 = smul.addr %s226, 8
      %s228 = scalar_lea.vmem %s0, %s227
      %p229 = scmp.lt.s32.totalorder %s16, 1
      %s230 = scalar_select %p229, %s16, 1
      %s231 = smul.addr %s230, 4
      %s232 = scalar_lea.vmem %s1, %s231
      %p233 = scmp.lt.s32.totalorder %s16, 1
      %s234 = scalar_select %p233, %s16, 1
      %s235 = smul.addr %s234, 8
      %s236 = scalar_lea.vmem %s5, %s235
      %v238 = vld [vmem:[%s228] sm:$0xff]
      %v239 = vpack.c.bf16 %v238, %v238
      %v240 = vld [vmem:[%s2] sm:$0xff]
      %v241 = vld [vmem:[%s2 + $0x8] sm:$0xff]
      %v242 = vld [vmem:[%s2 + $0x10] sm:$0xff]
      %v243 = vld [vmem:[%s2 + $0x18] sm:$0xff]
      %v244 = vld [vmem:[%s2 + $0x20] sm:$0xff]
      %v245 = vld [vmem:[%s2 + $0x28] sm:$0xff]
      %v246 = vld [vmem:[%s2 + $0x30] sm:$0xff]
      %v247 = vld [vmem:[%s2 + $0x38] sm:$0xff]
      %v248 = vld [vmem:[%s2 + $0x40] sm:$0xff]
      %v249 = vld [vmem:[%s2 + $0x48] sm:$0xff]
      %v250 = vld [vmem:[%s2 + $0x50] sm:$0xff]
      %v251 = vld [vmem:[%s2 + $0x58] sm:$0xff]
      %v252 = vld [vmem:[%s2 + $0x60] sm:$0xff]
      %v253 = vld [vmem:[%s2 + $0x68] sm:$0xff]
      %v254 = vld [vmem:[%s2 + $0x70] sm:$0xff]
      %v255 = vld [vmem:[%s2 + $0x78] sm:$0xff]
      %v272 = vunpack.c.l.b16 %v240
      %v273 = vunpack.c.h.b16 %v240
      %v274 = vunpack.c.l.b16 %v241
      %v275 = vunpack.c.h.b16 %v241
      %v276 = vunpack.c.l.b16 %v242
      %v277 = vunpack.c.h.b16 %v242
      %v278 = vunpack.c.l.b16 %v243
      %v279 = vunpack.c.h.b16 %v243
      %v280 = vunpack.c.l.b16 %v244
      %v281 = vunpack.c.h.b16 %v244
      %v282 = vunpack.c.l.b16 %v245
      %v283 = vunpack.c.h.b16 %v245
      %v284 = vunpack.c.l.b16 %v246
      %v285 = vunpack.c.h.b16 %v246
      %v286 = vunpack.c.l.b16 %v247
      %v287 = vunpack.c.h.b16 %v247
      %v288 = vunpack.c.l.b16 %v248
      %v289 = vunpack.c.h.b16 %v248
      %v290 = vunpack.c.l.b16 %v249
      %v291 = vunpack.c.h.b16 %v249
      %v292 = vunpack.c.l.b16 %v250
      %v293 = vunpack.c.h.b16 %v250
      %v294 = vunpack.c.l.b16 %v251
      %v295 = vunpack.c.h.b16 %v251
      %v296 = vunpack.c.l.b16 %v252
      %v297 = vunpack.c.h.b16 %v252
      %v298 = vunpack.c.l.b16 %v253
      %v299 = vunpack.c.h.b16 %v253
      %v300 = vunpack.c.l.b16 %v254
      %v301 = vunpack.c.h.b16 %v254
      %v302 = vunpack.c.l.b16 %v255
      %v303 = vunpack.c.h.b16 %v255
      %v304 = vpack.c.b16 %v274, %v272
      %v305 = vpack.c.b16 %v275, %v273
      %v306 = vpack.c.b16 %v278, %v276
      %v307 = vpack.c.b16 %v279, %v277
      %v308 = vpack.c.b16 %v282, %v280
      %v309 = vpack.c.b16 %v283, %v281
      %v310 = vpack.c.b16 %v286, %v284
      %v311 = vpack.c.b16 %v287, %v285
      %v312 = vpack.c.b16 %v290, %v288
      %v313 = vpack.c.b16 %v291, %v289
      %v314 = vpack.c.b16 %v294, %v292
      %v315 = vpack.c.b16 %v295, %v293
      %v316 = vpack.c.b16 %v298, %v296
      %v317 = vpack.c.b16 %v299, %v297
      %v318 = vpack.c.b16 %v302, %v300
      %v319 = vpack.c.b16 %v303, %v301
      %336 = vmatprep.subr.bf16.mxu0 %v305
      %337 = vmatpush1.bf16.msra.mxu0 %v304
      %338 = vmatprep.subr.bf16.mxu0 %v307
      %339 = vmatpush1.bf16.msra.mxu0 %v306
      %340 = vmatprep.subr.bf16.mxu0 %v309
      %341 = vmatpush1.bf16.msra.mxu0 %v308
      %342 = vmatprep.subr.bf16.mxu0 %v311
      %343 = vmatpush1.bf16.msra.mxu0 %v310
      %344 = vmatprep.subr.bf16.mxu0 %v313
      %345 = vmatpush1.bf16.msra.mxu0 %v312
      %346 = vmatprep.subr.bf16.mxu0 %v315
      %347 = vmatpush1.bf16.msra.mxu0 %v314
      %348 = vmatprep.subr.bf16.mxu0 %v317
      %349 = vmatpush1.bf16.msra.mxu0 %v316
      %350 = vmatprep.subr.bf16.mxu0 %v319
      %351 = vmatpush1.bf16.msra.mxu0 %v318
      %352 = vmatprep.subr.bf16.mxu0 0
      %353 = vmatpush1.bf16.msra.mxu0 0
      %354 = vmatprep.subr.bf16.mxu0 0
      %355 = vmatpush1.bf16.msra.mxu0 0
      %356 = vmatprep.subr.bf16.mxu0 0
      %357 = vmatpush1.bf16.msra.mxu0 0
      %358 = vmatprep.subr.bf16.mxu0 0
      %359 = vmatpush1.bf16.msra.mxu0 0
      %360 = vmatprep.subr.bf16.mxu0 0
      %361 = vmatpush1.bf16.msra.mxu0 0
      %362 = vmatprep.subr.bf16.mxu0 0
      %363 = vmatpush1.bf16.msra.mxu0 0
      %364 = vmatprep.subr.bf16.mxu0 0
      %365 = vmatpush1.bf16.msra.mxu0 0
      %366 = vmatprep.subr.bf16.mxu0 0
      %367 = vmatpush1.bf16.msra.mxu0 0
      %368 = vmatprep.mubr.bf16.mxu0 0
      %369 = vmatmul.mubr.bf16.gmra.mrb[0].mxu0 %v239
      %v370 = vpop.f32.mrb[0].mxu0
      %v371 = vadd.f32 0.0, %v370
      %v372 = vpop.f32.mrb[0].mxu0
      %v373 = vadd.f32 0.0, %v372
      %v374 = vpop.f32.mrb[0].mxu0
      %v375 = vpop.f32.mrb[0].mxu0
      %376 = vdwg.mxu0
      %v377 = vld [vmem:[%s4] sm:$0x1]
      %v378 = vlaneseq
      %v379 = vshrl.u32 %v378, 7
      %v380 = vsub.s32 0, %v379
      %v381 = vrot.slane %v377, %v380
      %v382 = vadd.f32 %v371, %v381
      %v383 = vld [vmem:[%s4 + $0x2] sm:$0x1]
      %v384 = vlaneseq
      %v385 = vshrl.u32 %v384, 7
      %v386 = vsub.s32 0, %v385
      %v387 = vrot.slane %v383, %v386
      %v388 = vadd.f32 %v373, %v387
      %v389 = vld [vmem:[%s232] sm:$0xf]
      %v390 = vpack.c.bf16 %v382, %v382
      %v391 = vld [vmem:[%s4 + $0x1] sm:$0x1]
      %v392 = vlaneseq
      %v393 = vshrl.u32 %v392, 7
      %v394 = vsub.s32 0, %v393
      %v395 = vrot.slane %v391, %v394
      %vm396 = vcmask 64512
      %v398 = vsel %vm396, %v389, 0
      %vm400 = vcmask 1043456
      %v402 = vsel %vm400, %v390, 0
      %404 = vmatprep.subr.bf16.mxu0 0
      %405 = vmatpush1.bf16.msra.mxu0 %v402
      %406 = vmatprep.subr.bf16.mxu0 0
      %407 = vmatpush1.bf16.msra.mxu0 0
      %408 = vmatprep.subr.bf16.mxu0 0
      %409 = vmatpush1.bf16.msra.mxu0 0
      %410 = vmatprep.subr.bf16.mxu0 0
      %411 = vmatpush1.bf16.msra.mxu0 0
      %412 = vmatprep.subr.bf16.mxu0 0
      %413 = vmatpush1.bf16.msra.mxu0 0
      %414 = vmatprep.subr.bf16.mxu0 0
      %415 = vmatpush1.bf16.msra.mxu0 0
      %416 = vmatprep.subr.bf16.mxu0 0
      %417 = vmatpush1.bf16.msra.mxu0 0
      %418 = vmatprep.subr.bf16.mxu0 0
      %419 = vmatpush1.bf16.msra.mxu0 0
      %420 = vmatprep.subr.bf16.mxu0 0
      %421 = vmatpush1.bf16.msra.mxu0 0
      %422 = vmatprep.subr.bf16.mxu0 0
      %423 = vmatpush1.bf16.msra.mxu0 0
      %424 = vmatprep.subr.bf16.mxu0 0
      %425 = vmatpush1.bf16.msra.mxu0 0
      %426 = vmatprep.subr.bf16.mxu0 0
      %427 = vmatpush1.bf16.msra.mxu0 0
      %428 = vmatprep.subr.bf16.mxu0 0
      %429 = vmatpush1.bf16.msra.mxu0 0
      %430 = vmatprep.subr.bf16.mxu0 0
      %431 = vmatpush1.bf16.msra.mxu0 0
      %432 = vmatprep.subr.bf16.mxu0 0
      %433 = vmatpush1.bf16.msra.mxu0 0
      %434 = vmatprep.subr.bf16.mxu0 0
      %435 = vmatpush1.bf16.msra.mxu0 0
      %436 = vmatprep.mubr.bf16.mxu0 0
      %437 = vmatmul.mubr.bf16.gmra.mrb[0].mxu0 %v398
      %v438 = vpop.f32.mrb[0].mxu0
      %v439 = vadd.f32 %v395, %v438
      %v440 = vpop.f32.mrb[0].mxu0
      %v441 = vpop.f32.mrb[0].mxu0
      %v442 = vpop.f32.mrb[0].mxu0
      %443 = vdwg.mxu0
      %v444 = vmax.f32 %v439, 0.0
      %v445 = vpack.c.bf16 %v444, %v444
      %v446 = vld [vmem:[%s3] sm:$0xf]
      %v447 = vld [vmem:[%s3 + $0x4] sm:$0xf]
      %v448 = vld [vmem:[%s3 + $0x8] sm:$0xf]
      %v449 = vld [vmem:[%s3 + $0xc] sm:$0xf]
      %v450 = vld [vmem:[%s3 + $0x10] sm:$0xf]
      %v451 = vld [vmem:[%s3 + $0x14] sm:$0xf]
      %v452 = vld [vmem:[%s3 + $0x18] sm:$0xf]
      %v453 = vld [vmem:[%s3 + $0x1c] sm:$0xf]
      %v454 = vld [vmem:[%s3 + $0x20] sm:$0xf]
      %v455 = vld [vmem:[%s3 + $0x24] sm:$0xf]
      %v456 = vld [vmem:[%s3 + $0x28] sm:$0xf]
      %v457 = vld [vmem:[%s3 + $0x2c] sm:$0xf]
      %v458 = vld [vmem:[%s3 + $0x30] sm:$0xf]
      %v459 = vld [vmem:[%s3 + $0x34] sm:$0xf]
      %v460 = vld [vmem:[%s3 + $0x38] sm:$0xf]
      %v461 = vld [vmem:[%s3 + $0x3c] sm:$0xf]
      %v462 = vld [vmem:[%s4 + $0x3] sm:$0x1]
      %v463 = vlaneseq
      %v464 = vshrl.u32 %v463, 7
      %v465 = vsub.s32 0, %v464
      %v466 = vrot.slane %v462, %v465
      %v483 = vunpack.c.l.b16 %v446
      %v484 = vunpack.c.l.b16 %v447
      %v485 = vunpack.c.l.b16 %v448
      %v486 = vunpack.c.l.b16 %v449
      %v487 = vunpack.c.l.b16 %v450
      %v488 = vunpack.c.l.b16 %v451
      %v489 = vunpack.c.l.b16 %v452
      %v490 = vunpack.c.l.b16 %v453
      %v491 = vunpack.c.l.b16 %v454
      %v492 = vunpack.c.l.b16 %v455
      %v493 = vunpack.c.l.b16 %v456
      %v494 = vunpack.c.l.b16 %v457
      %v495 = vunpack.c.l.b16 %v458
      %v496 = vunpack.c.l.b16 %v459
      %v497 = vunpack.c.l.b16 %v460
      %v498 = vunpack.c.l.b16 %v461
      %v499 = vpack.c.b16 %v484, %v483
      %v500 = vpack.c.b16 %v486, %v485
      %v501 = vpack.c.b16 %v488, %v487
      %v502 = vpack.c.b16 %v490, %v489
      %v503 = vpack.c.b16 %v492, %v491
      %v504 = vpack.c.b16 %v494, %v493
      %v505 = vpack.c.b16 %v496, %v495
      %v506 = vpack.c.b16 %v498, %v497
      %515 = vmatprep.subr.bf16.mxu0 0
      %516 = vmatpush1.bf16.msra.mxu0 %v499
      %517 = vmatprep.subr.bf16.mxu0 0
      %518 = vmatpush1.bf16.msra.mxu0 %v500
      %519 = vmatprep.subr.bf16.mxu0 0
      %520 = vmatpush1.bf16.msra.mxu0 %v501
      %521 = vmatprep.subr.bf16.mxu0 0
      %522 = vmatpush1.bf16.msra.mxu0 %v502
      %523 = vmatprep.subr.bf16.mxu0 0
      %524 = vmatpush1.bf16.msra.mxu0 %v503
      %525 = vmatprep.subr.bf16.mxu0 0
      %526 = vmatpush1.bf16.msra.mxu0 %v504
      %527 = vmatprep.subr.bf16.mxu0 0
      %528 = vmatpush1.bf16.msra.mxu0 %v505
      %529 = vmatprep.subr.bf16.mxu0 0
      %530 = vmatpush1.bf16.msra.mxu0 %v506
      %531 = vmatprep.subr.bf16.mxu0 0
      %532 = vmatpush1.bf16.msra.mxu0 0
      %533 = vmatprep.subr.bf16.mxu0 0
      %534 = vmatpush1.bf16.msra.mxu0 0
      %535 = vmatprep.subr.bf16.mxu0 0
      %536 = vmatpush1.bf16.msra.mxu0 0
      %537 = vmatprep.subr.bf16.mxu0 0
      %538 = vmatpush1.bf16.msra.mxu0 0
      %539 = vmatprep.subr.bf16.mxu0 0
      %540 = vmatpush1.bf16.msra.mxu0 0
      %541 = vmatprep.subr.bf16.mxu0 0
      %542 = vmatpush1.bf16.msra.mxu0 0
      %543 = vmatprep.subr.bf16.mxu0 0
      %544 = vmatpush1.bf16.msra.mxu0 0
      %545 = vmatprep.subr.bf16.mxu0 0
      %546 = vmatpush1.bf16.msra.mxu0 0
      %547 = vmatprep.mubr.bf16.mxu0 0
      %548 = vmatmul.mubr.bf16.gmra.mrb[0].mxu0 %v445
      %v549 = vpop.f32.mrb[0].mxu0
      %v550 = vadd.f32 %v466, %v549
      %v551 = vpop.f32.mrb[0].mxu0
      %v552 = vpop.f32.mrb[0].mxu0
      %v553 = vpop.f32.mrb[0].mxu0
      %554 = vdwg.mxu0
      %v555 = vadd.f32 %v388, %v550
      %v556 = vxor.u32 %v555, 2147483648
      %v557 = vmul.f32 %v556, 1.442695
      %v558 = vpow.pop %v557
      %v559 = vadd.f32 %v558, 1.0
      %v560 = vrcp.pop %v559
      %v561 = vmul.f32 1.0, %v560
      %v562 = vsub.f32 %v388, %v550
      %v563 = vmul.f32 %v561, %v562
      %v564 = vadd.f32 %v550, %v563
      %v565 = vld [vmem:[%s4 + $0x4] sm:$0x1]
      %v566 = vlaneseq
      %v567 = vshrl.u32 %v566, 7
      %v568 = vsub.s32 0, %v567
      %v569 = vrot.slane %v565, %v568
      %v570 = vmul.f32 %v564, %v569
      %v571 = vld [vmem:[%s4 + $0x5] sm:$0x1]
      %v572 = vlaneseq
      %v573 = vshrl.u32 %v572, 7
      %v574 = vsub.s32 0, %v573
      %v575 = vrot.slane %v571, %v574
      %v576 = vadd.f32 %v570, %v575
      %v577 = vmax.f32 %v576, 0.0
      %578 = vst [vmem:[%s236] sm:$0xff] %v577
      %p579 = scmp.lt.s32.totalorder %s16, 1
      %s580 = scalar_select %p579, %s16, 1
      %s581 = smul.addr %s580, 8
      %s582 = scalar_lea.vmem %s5, %s581
      // Predicated region
      $region41: #{_lambda_.4} parent=39 // pred_check
        %p583 = pneg %p149
      $region42: #{_lambda_.4} parent=39 // pred_check_branch
        %585 = sbr.rel (%p583) target = $region44
      $region43: #{_lambda_.4} parent=39 // pred_region
        _
      $region44: #{_lambda_.4} parent=39 // pred_fallthru
        _
    $region40: #{_lambda_.4} parent=5 // pred_fallthru
      _
    %p586 = scmp.le.s32.totalorder 2, %s11
    // Predicated region
    $region45: #{_lambda_.4} parent=5 // pred_check
      %p587 = pneg %p586
    $region46: #{_lambda_.4} parent=5 // pred_check_branch
      %589 = sbr.rel (%p587) target = $region48
    $region47: #{_lambda_.4} parent=5 // pred_region
      %s590 = ssub.s32 %s11, 2
      // Predicated region
      $region49: #{_lambda_.4} parent=47 // pred_check
        %p591 = pneg %p155
      $region50: #{_lambda_.4} parent=47 // pred_check_branch
        %593 = sbr.rel (%p591) target = $region52
      $region51: #{_lambda_.4} parent=47 // pred_region
        %p594 = scmp.lt.s32.totalorder %s17, 1
        %s595 = scalar_select %p594, %s17, 1
        %s596 = smul.addr %s595, 8
        %s597 = scalar_lea.vmem %s5, %s596
      $region52: #{_lambda_.4} parent=47 // pred_fallthru
        _
    $region48: #{_lambda_.4} parent=5 // pred_fallthru
      _
  $region6: #{_lambda_.4} parent=0 // loop_footer
    %s15 = sadd.s32 1, %s11
  $region7: #{_lambda_.4} parent=0 // loop_footer_branch
    %10 = sbr.rel target = $region3
  $region8: #{_lambda_.4} parent=0 // loop_exit
    _

// kernel: _lambda_.3
$region0: #{_lambda_.3}
  #allocation0 [shape = 'u32[]', space=smem, size = 0x4, offset = 0x4, fixed_abs, tag = 'smem constant byte address 0x4 - core index']
  #allocation1 [shape = 'u32[144,128]{1,0:T(1,128)}', space=vmem, size = 0x12000, scoped, tag = 'internal scratch']
  %s0 = inlined_call_operand.vmem [shape: f32[2,8,16], index: 0, kind: input, shape index: {}]
  %s1 = inlined_call_operand.vmem [shape: bf16[2,8,8], index: 1, kind: input, shape index: {}]
  %s2 = inlined_call_operand.vmem [shape: bf16[16,256], index: 2, kind: input, shape index: {}]
  %s3 = inlined_call_operand.vmem [shape: bf16[128,128], index: 3, kind: input, shape index: {}]
  %s4 = inlined_call_operand.vmem [shape: f32[8,128], index: 4, kind: input, shape index: {}]
  %s5 = inlined_call_operand.vmem [shape: f32[2,8,128], index: 5, kind: output, shape index: {}]
  %s6 = sld [smem:[#allocation0]]
  $region53: #{_lambda_.3} parent=0
    _
  %s8 = ssub.s32 1, %s6
  %s9 = scalar_select 0, %s8, %s6
  loop: start=0, step=1, limit=4
  $region2: #{_lambda_.3} parent=0 // loop_pre_header
    _
  $region3: #{_lambda_.3} parent=0 // loop_header
    %s11 = sphi 0, %s15
    %p12 = scmp.ge.s32.totalorder %s11, 4
    %s21 = sphi 0, %s23
    %s24 = sphi 0, %s21
    %s25 = sphi 0, %s24
    %s41 = sphi 0, %s25
    %s47 = sphi 0, %s49
    %s50 = sphi 0, %s47
    %s51 = sphi 0, %s50
    %s67 = sphi 0, %s51
    %s71 = sphi 0, %s71
    %s73 = sphi 0, %s71
    %s74 = sphi 0, %s73
    %s88 = sphi 0, %s74
    %s92 = sphi 0, %s92
    %s94 = sphi 0, %s92
    %s95 = sphi 0, %s94
    %s109 = sphi 0, %s95
    %s113 = sphi 0, %s113
    %s115 = sphi 0, %s113
    %s116 = sphi 0, %s115
    %s130 = sphi 0, %s116
    %s136 = sphi 0, %s138
    %s139 = sphi 0, %s136
    %s140 = sphi 0, %s139
    %s156 = sphi 0, %s140
  $region4: #{_lambda_.3} parent=0 // loop_header_branch
    %14 = sbr.rel (%p12) target = $region8
  $region5: #{_lambda_.3} parent=0 // loop_body
    %s16 = ssub.s32 %s11, 1
    %s17 = ssub.s32 %s11, 2
    %s18 = sadd.s32 %s11, 1
    %s19 = ssub.s32 %s11, %s18
    %p20 = scmp.eq.s32.totalorder %s19, 0
    %s22 = sadd.s32 %s21, 1
    %s23 = scalar_select %p20, %s21, %s22
    %p26 = pneg %p20
    %p27 = scmp.eq.s32.totalorder %s11, 1
    %p28 = por %p26, %p27
    %p29 = scmp.ne.s32.totalorder %s21, %s24
    %p30 = scmp.eq.s32.totalorder %s11, 0
    %p31 = por %p29, %p30
    %p32 = scmp.ne.s32.totalorder %s21, %s24
    %p33 = scmp.eq.s32.totalorder %s16, 1
    %p34 = por %p32, %p33
    %p35 = scmp.ne.s32.totalorder %s24, %s25
    %p36 = scmp.eq.s32.totalorder %s16, 0
    %p37 = por %p35, %p36
    %p38 = scmp.ne.s32.totalorder %s24, %s25
    %p39 = scmp.eq.s32.totalorder %s17, 1
    %p40 = por %p38, %p39
    %p42 = scmp.ne.s32.totalorder %s25, %s41
    %p43 = scmp.eq.s32.totalorder %s17, 0
    %p44 = por %p42, %p43
    %s45 = ssub.s32 %s11, %s18
    %p46 = scmp.eq.s32.totalorder %s45, 0
    %s48 = sadd.s32 %s47, 1
    %s49 = scalar_select %p46, %s47, %s48
    %p52 = pneg %p46
    %p53 = scmp.eq.s32.totalorder %s11, 1
    %p54 = por %p52, %p53
    %p55 = scmp.ne.s32.totalorder %s47, %s50
    %p56 = scmp.eq.s32.totalorder %s11, 0
    %p57 = por %p55, %p56
    %p58 = scmp.ne.s32.totalorder %s47, %s50
    %p59 = scmp.eq.s32.totalorder %s16, 1
    %p60 = por %p58, %p59
    %p61 = scmp.ne.s32.totalorder %s50, %s51
    %p62 = scmp.eq.s32.totalorder %s16, 0
    %p63 = por %p61, %p62
    %p64 = scmp.ne.s32.totalorder %s50, %s51
    %p65 = scmp.eq.s32.totalorder %s17, 1
    %p66 = por %p64, %p65
    %p68 = scmp.ne.s32.totalorder %s51, %s67
    %p69 = scmp.eq.s32.totalorder %s17, 0
    %p70 = por %p68, %p69
    %s72 = sadd.s32 %s71, 1
    %p75 = scmp.eq.s32.totalorder %s11, 1
    %p76 = scmp.ne.s32.totalorder %s71, %s73
    %p77 = scmp.eq.s32.totalorder %s11, 0
    %p78 = por %p76, %p77
    %p79 = scmp.ne.s32.totalorder %s71, %s73
    %p80 = scmp.eq.s32.totalorder %s16, 1
    %p81 = por %p79, %p80
    %p82 = scmp.ne.s32.totalorder %s73, %s74
    %p83 = scmp.eq.s32.totalorder %s16, 0
    %p84 = por %p82, %p83
    %p85 = scmp.ne.s32.totalorder %s73, %s74
    %p86 = scmp.eq.s32.totalorder %s17, 1
    %p87 = por %p85, %p86
    %p89 = scmp.ne.s32.totalorder %s74, %s88
    %p90 = scmp.eq.s32.totalorder %s17, 0
    %p91 = por %p89, %p90
    %s93 = sadd.s32 %s92, 1
    %p96 = scmp.eq.s32.totalorder %s11, 1
    %p97 = scmp.ne.s32.totalorder %s92, %s94
    %p98 = scmp.eq.s32.totalorder %s11, 0
    %p99 = por %p97, %p98
    %p100 = scmp.ne.s32.totalorder %s92, %s94
    %p101 = scmp.eq.s32.totalorder %s16, 1
    %p102 = por %p100, %p101
    %p103 = scmp.ne.s32.totalorder %s94, %s95
    %p104 = scmp.eq.s32.totalorder %s16, 0
    %p105 = por %p103, %p104
    %p106 = scmp.ne.s32.totalorder %s94, %s95
    %p107 = scmp.eq.s32.totalorder %s17, 1
    %p108 = por %p106, %p107
    %p110 = scmp.ne.s32.totalorder %s95, %s109
    %p111 = scmp.eq.s32.totalorder %s17, 0
    %p112 = por %p110, %p111
    %s114 = sadd.s32 %s113, 1
    %p117 = scmp.eq.s32.totalorder %s11, 1
    %p118 = scmp.ne.s32.totalorder %s113, %s115
    %p119 = scmp.eq.s32.totalorder %s11, 0
    %p120 = por %p118, %p119
    %p121 = scmp.ne.s32.totalorder %s113, %s115
    %p122 = scmp.eq.s32.totalorder %s16, 1
    %p123 = por %p121, %p122
    %p124 = scmp.ne.s32.totalorder %s115, %s116
    %p125 = scmp.eq.s32.totalorder %s16, 0
    %p126 = por %p124, %p125
    %p127 = scmp.ne.s32.totalorder %s115, %s116
    %p128 = scmp.eq.s32.totalorder %s17, 1
    %p129 = por %p127, %p128
    %p131 = scmp.ne.s32.totalorder %s116, %s130
    %p132 = scmp.eq.s32.totalorder %s17, 0
    %p133 = por %p131, %p132
    %s134 = ssub.s32 %s11, %s18
    %p135 = scmp.eq.s32.totalorder %s134, 0
    %s137 = sadd.s32 %s136, 1
    %s138 = scalar_select %p135, %s136, %s137
    %p141 = pneg %p135
    %p142 = scmp.eq.s32.totalorder %s11, 1
    %p143 = por %p141, %p142
    %p144 = scmp.ne.s32.totalorder %s136, %s139
    %p145 = scmp.eq.s32.totalorder %s11, 0
    %p146 = por %p144, %p145
    %p147 = scmp.ne.s32.totalorder %s136, %s139
    %p148 = scmp.eq.s32.totalorder %s16, 1
    %p149 = por %p147, %p148
    %p150 = scmp.ne.s32.totalorder %s139, %s140
    %p151 = scmp.eq.s32.totalorder %s16, 0
    %p152 = por %p150, %p151
    %p153 = scmp.ne.s32.totalorder %s139, %s140
    %p154 = scmp.eq.s32.totalorder %s17, 1
    %p155 = por %p153, %p154
    %p157 = scmp.ne.s32.totalorder %s140, %s156
    %p158 = scmp.eq.s32.totalorder %s17, 0
    %p159 = por %p157, %p158
    %p160 = scmp.le.s32.totalorder 1, %s11
    %p161 = scmp.lt.s32.totalorder %s11, 3
    %p162 = pnand %p160, %p161
    %p163 = pneg %p162
    // Predicated region
    $region9: #{_lambda_.3} parent=5 // pred_check
      _
    $region10: #{_lambda_.3} parent=5 // pred_check_branch
      %165 = sbr.rel (%p162) target = $region12
    $region11: #{_lambda_.3} parent=5 // pred_region
      %s166 = ssub.s32 %s11, 1
      // Predicated region
      $region13: #{_lambda_.3} parent=11 // pred_check
        %p167 = pneg %p84
      $region14: #{_lambda_.3} parent=11 // pred_check_branch
        %169 = sbr.rel (%p167) target = $region16
      $region15: #{_lambda_.3} parent=11 // pred_region
        _
      $region16: #{_lambda_.3} parent=11 // pred_fallthru
        _
      // Predicated region
      $region17: #{_lambda_.3} parent=11 // pred_check
        %p170 = pneg %p105
      $region18: #{_lambda_.3} parent=11 // pred_check_branch
        %172 = sbr.rel (%p170) target = $region20
      $region19: #{_lambda_.3} parent=11 // pred_region
        _
      $region20: #{_lambda_.3} parent=11 // pred_fallthru
        _
      // Predicated region
      $region21: #{_lambda_.3} parent=11 // pred_check
        %p173 = pneg %p126
      $region22: #{_lambda_.3} parent=11 // pred_check_branch
        %175 = sbr.rel (%p173) target = $region24
      $region23: #{_lambda_.3} parent=11 // pred_region
        _
      $region24: #{_lambda_.3} parent=11 // pred_fallthru
        _
    $region12: #{_lambda_.3} parent=5 // pred_fallthru
      _
    %p176 = scmp.lt.s32.totalorder %s11, 2
    // Predicated region
    $region25: #{_lambda_.3} parent=5 // pred_check
      %p177 = pneg %p176
    $region26: #{_lambda_.3} parent=5 // pred_check_branch
      %179 = sbr.rel (%p177) target = $region28
    $region27: #{_lambda_.3} parent=5 // pred_region
      // Predicated region
      $region29: #{_lambda_.3} parent=27 // pred_check
        %p180 = pneg %p31
      $region30: #{_lambda_.3} parent=27 // pred_check_branch
        %182 = sbr.rel (%p180) target = $region32
      $region31: #{_lambda_.3} parent=27 // pred_region
        %p183 = scmp.lt.s32.totalorder %s11, 1
        %s184 = scalar_select %p183, %s11, 1
        %s185 = smul.addr %s184, 8
        %s186 = scalar_lea.vmem %s0, %s185
      $region32: #{_lambda_.3} parent=27 // pred_fallthru
        _
      // Predicated region
      $region33: #{_lambda_.3} parent=27 // pred_check
        %p187 = pneg %p57
      $region34: #{_lambda_.3} parent=27 // pred_check_branch
        %189 = sbr.rel (%p187) target = $region36
      $region35: #{_lambda_.3} parent=27 // pred_region
        %p190 = scmp.lt.s32.totalorder %s11, 1
        %s191 = scalar_select %p190, %s11, 1
        %s192 = smul.addr %s191, 4
        %s193 = scalar_lea.vmem %s1, %s192
      $region36: #{_lambda_.3} parent=27 // pred_fallthru
        _
    $region28: #{_lambda_.3} parent=5 // pred_fallthru
      _
    %p194 = scmp.le.s32.totalorder 1, %s11
    %p195 = scmp.lt.s32.totalorder %s11, 3
    %p196 = pnand %p194, %p195
    %p197 = pneg %p196
    // Predicated region
    $region37: #{_lambda_.3} parent=5 // pred_check
      _
    $region38: #{_lambda_.3} parent=5 // pred_check_branch
      %199 = sbr.rel (%p196) target = $region40
    $region39: #{_lambda_.3} parent=5 // pred_region
      %s200 = ssub.s32 %s11, 1
      %p201 = scmp.lt.s32.totalorder %s16, 1
      %s202 = scalar_select %p201, %s16, 1
      %s203 = smul.addr %s202, 8
      %s204 = scalar_lea.vmem %s0, %s203
      %p205 = pneg %p37
      %p206 = pneg %p34
      %p207 = scmp.lt.s32.totalorder %s16, 1
      %s208 = scalar_select %p207, %s16, 1
      %s209 = smul.addr %s208, 4
      %s210 = scalar_lea.vmem %s1, %s209
      %p211 = pneg %p63
      %p212 = pneg %p60
      %p213 = pneg %p84
      %p214 = pneg %p81
      %p215 = pneg %p105
      %p216 = pneg %p102
      %p217 = pneg %p126
      %p218 = pneg %p123
      %p219 = pneg %p152
      %p220 = pneg %p149
      %p221 = scmp.lt.s32.totalorder %s16, 1
      %s222 = scalar_select %p221, %s16, 1
      %s223 = smul.addr %s222, 8
      %s224 = scalar_lea.vmem %s5, %s223
      %p225 = scmp.lt.s32.totalorder %s16, 1
      %s226 = scalar_select %p225, %s16, 1
      %s227 = smul.addr %s226, 8
      %s228 = scalar_lea.vmem %s0, %s227
      %p229 = scmp.lt.s32.totalorder %s16, 1
      %s230 = scalar_select %p229, %s16, 1
      %s231 = smul.addr %s230, 4
      %s232 = scalar_lea.vmem %s1, %s231
      %p233 = scmp.lt.s32.totalorder %s16, 1
      %s234 = scalar_select %p233, %s16, 1
      %s235 = smul.addr %s234, 8
      %s236 = scalar_lea.vmem %s5, %s235
      %v238 = vld [vmem:[%s228] sm:$0xff]
      %v239 = vpack.c.bf16 %v238, %v238
      %v240 = vld [vmem:[%s2] sm:$0xff]
      %v241 = vld [vmem:[%s2 + $0x8] sm:$0xff]
      %v244 = vunpack.c.l.b16 %v240
      %v245 = vunpack.c.h.b16 %v240
      %v246 = vunpack.c.l.b16 %v241
      %v247 = vunpack.c.h.b16 %v241
      %v248 = vpack.c.b16 %v246, %v244
      %v249 = vpack.c.b16 %v247, %v245
      %vm252 = vcmask 130048
      %v254 = vsel %vm252, %v239, 0
      %256 = vmatprep.subr.bf16.mxu0 %v249
      %257 = vmatpush1.bf16.msra.mxu0 %v248
      %258 = vmatprep.subr.bf16.mxu0 0
      %259 = vmatpush1.bf16.msra.mxu0 0
      %260 = vmatprep.subr.bf16.mxu0 0
      %261 = vmatpush1.bf16.msra.mxu0 0
      %262 = vmatprep.subr.bf16.mxu0 0
      %263 = vmatpush1.bf16.msra.mxu0 0
      %264 = vmatprep.subr.bf16.mxu0 0
      %265 = vmatpush1.bf16.msra.mxu0 0
      %266 = vmatprep.subr.bf16.mxu0 0
      %267 = vmatpush1.bf16.msra.mxu0 0
      %268 = vmatprep.subr.bf16.mxu0 0
      %269 = vmatpush1.bf16.msra.mxu0 0
      %270 = vmatprep.subr.bf16.mxu0 0
      %271 = vmatpush1.bf16.msra.mxu0 0
      %272 = vmatprep.subr.bf16.mxu0 0
      %273 = vmatpush1.bf16.msra.mxu0 0
      %274 = vmatprep.subr.bf16.mxu0 0
      %275 = vmatpush1.bf16.msra.mxu0 0
      %276 = vmatprep.subr.bf16.mxu0 0
      %277 = vmatpush1.bf16.msra.mxu0 0
      %278 = vmatprep.subr.bf16.mxu0 0
      %279 = vmatpush1.bf16.msra.mxu0 0
      %280 = vmatprep.subr.bf16.mxu0 0
      %281 = vmatpush1.bf16.msra.mxu0 0
      %282 = vmatprep.subr.bf16.mxu0 0
      %283 = vmatpush1.bf16.msra.mxu0 0
      %284 = vmatprep.subr.bf16.mxu0 0
      %285 = vmatpush1.bf16.msra.mxu0 0
      %286 = vmatprep.subr.bf16.mxu0 0
      %287 = vmatpush1.bf16.msra.mxu0 0
      %288 = vmatprep.mubr.bf16.mxu0 0
      %289 = vmatmul.mubr.bf16.gmra.mrb[0].mxu0 %v254
      %v290 = vpop.f32.mrb[0].mxu0
      %v291 = vadd.f32 0.0, %v290
      %v292 = vpop.f32.mrb[0].mxu0
      %v293 = vadd.f32 0.0, %v292
      %v294 = vpop.f32.mrb[0].mxu0
      %v295 = vpop.f32.mrb[0].mxu0
      %296 = vdwg.mxu0
      %v297 = vld [vmem:[%s4] sm:$0x1]
      %v298 = vlaneseq
      %v299 = vshrl.u32 %v298, 7
      %v300 = vsub.s32 0, %v299
      %v301 = vrot.slane %v297, %v300
      %v302 = vadd.f32 %v291, %v301
      %v303 = vld [vmem:[%s4 + $0x2] sm:$0x1]
      %v304 = vlaneseq
      %v305 = vshrl.u32 %v304, 7
      %v306 = vsub.s32 0, %v305
      %v307 = vrot.slane %v303, %v306
      %v308 = vadd.f32 %v293, %v307
      %v309 = vld [vmem:[%s232] sm:$0xf]
      %v310 = vpack.c.bf16 %v302, %v302
      %v311 = vld [vmem:[%s4 + $0x1] sm:$0x1]
      %v312 = vlaneseq
      %v313 = vshrl.u32 %v312, 7
      %v314 = vsub.s32 0, %v313
      %v315 = vrot.slane %v311, %v314
      %vm316 = vcmask 64512
      %v318 = vsel %vm316, %v309, 0
      %vm320 = vcmask 1043456
      %v322 = vsel %vm320, %v310, 0
      %324 = vmatprep.subr.bf16.mxu0 0
      %325 = vmatpush1.bf16.msra.mxu0 %v322
      %326 = vmatprep.subr.bf16.mxu0 0
      %327 = vmatpush1.bf16.msra.mxu0 0
      %328 = vmatprep.subr.bf16.mxu0 0
      %329 = vmatpush1.bf16.msra.mxu0 0
      %330 = vmatprep.subr.bf16.mxu0 0
      %331 = vmatpush1.bf16.msra.mxu0 0
      %332 = vmatprep.subr.bf16.mxu0 0
      %333 = vmatpush1.bf16.msra.mxu0 0
      %334 = vmatprep.subr.bf16.mxu0 0
      %335 = vmatpush1.bf16.msra.mxu0 0
      %336 = vmatprep.subr.bf16.mxu0 0
      %337 = vmatpush1.bf16.msra.mxu0 0
      %338 = vmatprep.subr.bf16.mxu0 0
      %339 = vmatpush1.bf16.msra.mxu0 0
      %340 = vmatprep.subr.bf16.mxu0 0
      %341 = vmatpush1.bf16.msra.mxu0 0
      %342 = vmatprep.subr.bf16.mxu0 0
      %343 = vmatpush1.bf16.msra.mxu0 0
      %344 = vmatprep.subr.bf16.mxu0 0
      %345 = vmatpush1.bf16.msra.mxu0 0
      %346 = vmatprep.subr.bf16.mxu0 0
      %347 = vmatpush1.bf16.msra.mxu0 0
      %348 = vmatprep.subr.bf16.mxu0 0
      %349 = vmatpush1.bf16.msra.mxu0 0
      %350 = vmatprep.subr.bf16.mxu0 0
      %351 = vmatpush1.bf16.msra.mxu0 0
      %352 = vmatprep.subr.bf16.mxu0 0
      %353 = vmatpush1.bf16.msra.mxu0 0
      %354 = vmatprep.subr.bf16.mxu0 0
      %355 = vmatpush1.bf16.msra.mxu0 0
      %356 = vmatprep.mubr.bf16.mxu0 0
      %357 = vmatmul.mubr.bf16.gmra.mrb[0].mxu0 %v318
      %v358 = vpop.f32.mrb[0].mxu0
      %v359 = vadd.f32 %v315, %v358
      %v360 = vpop.f32.mrb[0].mxu0
      %v361 = vpop.f32.mrb[0].mxu0
      %v362 = vpop.f32.mrb[0].mxu0
      %363 = vdwg.mxu0
      %v364 = vmax.f32 %v359, 0.0
      %v365 = vpack.c.bf16 %v364, %v364
      %v366 = vld [vmem:[%s3] sm:$0xf]
      %v367 = vld [vmem:[%s3 + $0x4] sm:$0xf]
      %v368 = vld [vmem:[%s3 + $0x8] sm:$0xf]
      %v369 = vld [vmem:[%s3 + $0xc] sm:$0xf]
      %v370 = vld [vmem:[%s3 + $0x10] sm:$0xf]
      %v371 = vld [vmem:[%s3 + $0x14] sm:$0xf]
      %v372 = vld [vmem:[%s3 + $0x18] sm:$0xf]
      %v373 = vld [vmem:[%s3 + $0x1c] sm:$0xf]
      %v374 = vld [vmem:[%s3 + $0x20] sm:$0xf]
      %v375 = vld [vmem:[%s3 + $0x24] sm:$0xf]
      %v376 = vld [vmem:[%s3 + $0x28] sm:$0xf]
      %v377 = vld [vmem:[%s3 + $0x2c] sm:$0xf]
      %v378 = vld [vmem:[%s3 + $0x30] sm:$0xf]
      %v379 = vld [vmem:[%s3 + $0x34] sm:$0xf]
      %v380 = vld [vmem:[%s3 + $0x38] sm:$0xf]
      %v381 = vld [vmem:[%s3 + $0x3c] sm:$0xf]
      %v382 = vld [vmem:[%s4 + $0x3] sm:$0x1]
      %v383 = vlaneseq
      %v384 = vshrl.u32 %v383, 7
      %v385 = vsub.s32 0, %v384
      %v386 = vrot.slane %v382, %v385
      %v403 = vunpack.c.l.b16 %v366
      %v404 = vunpack.c.l.b16 %v367
      %v405 = vunpack.c.l.b16 %v368
      %v406 = vunpack.c.l.b16 %v369
      %v407 = vunpack.c.l.b16 %v370
      %v408 = vunpack.c.l.b16 %v371
      %v409 = vunpack.c.l.b16 %v372
      %v410 = vunpack.c.l.b16 %v373
      %v411 = vunpack.c.l.b16 %v374
      %v412 = vunpack.c.l.b16 %v375
      %v413 = vunpack.c.l.b16 %v376
      %v414 = vunpack.c.l.b16 %v377
      %v415 = vunpack.c.l.b16 %v378
      %v416 = vunpack.c.l.b16 %v379
      %v417 = vunpack.c.l.b16 %v380
      %v418 = vunpack.c.l.b16 %v381
      %v419 = vpack.c.b16 %v404, %v403
      %v420 = vpack.c.b16 %v406, %v405
      %v421 = vpack.c.b16 %v408, %v407
      %v422 = vpack.c.b16 %v410, %v409
      %v423 = vpack.c.b16 %v412, %v411
      %v424 = vpack.c.b16 %v414, %v413
      %v425 = vpack.c.b16 %v416, %v415
      %v426 = vpack.c.b16 %v418, %v417
      %435 = vmatprep.subr.bf16.mxu0 0
      %436 = vmatpush1.bf16.msra.mxu0 %v419
      %437 = vmatprep.subr.bf16.mxu0 0
      %438 = vmatpush1.bf16.msra.mxu0 %v420
      %439 = vmatprep.subr.bf16.mxu0 0
      %440 = vmatpush1.bf16.msra.mxu0 %v421
      %441 = vmatprep.subr.bf16.mxu0 0
      %442 = vmatpush1.bf16.msra.mxu0 %v422
      %443 = vmatprep.subr.bf16.mxu0 0
      %444 = vmatpush1.bf16.msra.mxu0 %v423
      %445 = vmatprep.subr.bf16.mxu0 0
      %446 = vmatpush1.bf16.msra.mxu0 %v424
      %447 = vmatprep.subr.bf16.mxu0 0
      %448 = vmatpush1.bf16.msra.mxu0 %v425
      %449 = vmatprep.subr.bf16.mxu0 0
      %450 = vmatpush1.bf16.msra.mxu0 %v426
      %451 = vmatprep.subr.bf16.mxu0 0
      %452 = vmatpush1.bf16.msra.mxu0 0
      %453 = vmatprep.subr.bf16.mxu0 0
      %454 = vmatpush1.bf16.msra.mxu0 0
      %455 = vmatprep.subr.bf16.mxu0 0
      %456 = vmatpush1.bf16.msra.mxu0 0
      %457 = vmatprep.subr.bf16.mxu0 0
      %458 = vmatpush1.bf16.msra.mxu0 0
      %459 = vmatprep.subr.bf16.mxu0 0
      %460 = vmatpush1.bf16.msra.mxu0 0
      %461 = vmatprep.subr.bf16.mxu0 0
      %462 = vmatpush1.bf16.msra.mxu0 0
      %463 = vmatprep.subr.bf16.mxu0 0
      %464 = vmatpush1.bf16.msra.mxu0 0
      %465 = vmatprep.subr.bf16.mxu0 0
      %466 = vmatpush1.bf16.msra.mxu0 0
      %467 = vmatprep.mubr.bf16.mxu0 0
      %468 = vmatmul.mubr.bf16.gmra.mrb[0].mxu0 %v365
      %v469 = vpop.f32.mrb[0].mxu0
      %v470 = vadd.f32 %v386, %v469
      %v471 = vpop.f32.mrb[0].mxu0
      %v472 = vpop.f32.mrb[0].mxu0
      %v473 = vpop.f32.mrb[0].mxu0
      %474 = vdwg.mxu0
      %v475 = vadd.f32 %v308, %v470
      %v476 = vxor.u32 %v475, 2147483648
      %v477 = vmul.f32 %v476, 1.442695
      %v478 = vpow.pop %v477
      %v479 = vadd.f32 %v478, 1.0
      %v480 = vrcp.pop %v479
      %v481 = vmul.f32 1.0, %v480
      %v482 = vsub.f32 %v308, %v470
      %v483 = vmul.f32 %v481, %v482
      %v484 = vadd.f32 %v470, %v483
      %v485 = vld [vmem:[%s4 + $0x4] sm:$0x1]
      %v486 = vlaneseq
      %v487 = vshrl.u32 %v486, 7
      %v488 = vsub.s32 0, %v487
      %v489 = vrot.slane %v485, %v488
      %v490 = vmul.f32 %v484, %v489
      %v491 = vld [vmem:[%s4 + $0x5] sm:$0x1]
      %v492 = vlaneseq
      %v493 = vshrl.u32 %v492, 7
      %v494 = vsub.s32 0, %v493
      %v495 = vrot.slane %v491, %v494
      %v496 = vadd.f32 %v490, %v495
      %v497 = vmax.f32 %v496, 0.0
      %498 = vst [vmem:[%s236] sm:$0xff] %v497
      %p499 = scmp.lt.s32.totalorder %s16, 1
      %s500 = scalar_select %p499, %s16, 1
      %s501 = smul.addr %s500, 8
      %s502 = scalar_lea.vmem %s5, %s501
      // Predicated region
      $region41: #{_lambda_.3} parent=39 // pred_check
        %p503 = pneg %p149
      $region42: #{_lambda_.3} parent=39 // pred_check_branch
        %505 = sbr.rel (%p503) target = $region44
      $region43: #{_lambda_.3} parent=39 // pred_region
        _
      $region44: #{_lambda_.3} parent=39 // pred_fallthru
        _
    $region40: #{_lambda_.3} parent=5 // pred_fallthru
      _
    %p506 = scmp.le.s32.totalorder 2, %s11
    // Predicated region
    $region45: #{_lambda_.3} parent=5 // pred_check
      %p507 = pneg %p506
    $region46: #{_lambda_.3} parent=5 // pred_check_branch
      %509 = sbr.rel (%p507) target = $region48
    $region47: #{_lambda_.3} parent=5 // pred_region
      %s510 = ssub.s32 %s11, 2
      // Predicated region
      $region49: #{_lambda_.3} parent=47 // pred_check
        %p511 = pneg %p155
      $region50: #{_lambda_.3} parent=47 // pred_check_branch
        %513 = sbr.rel (%p511) target = $region52
      $region51: #{_lambda_.3} parent=47 // pred_region
        %p514 = scmp.lt.s32.totalorder %s17, 1
        %s515 = scalar_select %p514, %s17, 1
        %s516 = smul.addr %s515, 8
        %s517 = scalar_lea.vmem %s5, %s516
      $region52: #{_lambda_.3} parent=47 // pred_fallthru
        _
    $region48: #{_lambda_.3} parent=5 // pred_fallthru
      _
  $region6: #{_lambda_.3} parent=0 // loop_footer
    %s15 = sadd.s32 1, %s11
  $region7: #{_lambda_.3} parent=0 // loop_footer_branch
    %10 = sbr.rel target = $region3
  $region8: #{_lambda_.3} parent=0 // loop_exit
    _

</llo_original>
